<compile_context>
chip_gen: v6e
topology: v6e:2x2x1
jax: 0.10.0
libtpu: 0.0.40
codegen_flags: <defaults>
</compile_context>

<pallas_src>
import jax
import jax.numpy as jnp
from jax.experimental import pallas as pl
from jax.experimental.pallas import tpu as pltpu

# Small, self-consistent hyper-parameters (module defaults are 200/50/(1,28,28);
# reduced sizes used here).
IM_SHAPE = (1, 16, 16)          # (C, H, W)
H_DIM = 64
Z_DIM = 32
EPS = 1e-4
D = IM_SHAPE[0] * IM_SHAPE[1] * IM_SHAPE[2]

MATMUL_DTYPE = jnp.bfloat16     # MXU operand dtype (f32 accumulation)

# ---- packed-parameter layout (static, sublane/lane-friendly offsets) -------
# wpack rows: [w1 (D) | w2 (H) | wh (H) | w3 (Z) | w4 (H)], all 64 columns.
_R_W1 = 0
_R_W2 = _R_W1 + D               # 256
_R_WH = _R_W2 + H_DIM           # 320
_R_W3 = _R_WH + H_DIM           # 384
_R_W4 = _R_W3 + Z_DIM           # 416
_R_END = _R_W4 + H_DIM          # 480
# bpack cols: [b1 | b2 | bh | b3 | b4 | bd]
_C_B1 = 0
_C_B2 = _C_B1 + H_DIM           # 64
_C_BH = _C_B2 + H_DIM           # 128
_C_B3 = _C_BH + 2 * Z_DIM       # 192
_C_B4 = _C_B3 + H_DIM           # 256
_C_BD = _C_B4 + H_DIM           # 320
_C_END = _C_BD + D              # 576


def _vae_kernel(x_ref, noise_ref, wpack_ref, wd_ref, bpack_ref, out_ref):
    f32 = jnp.float32

    def mm(a, w, b):
        # bf16 MXU operands, f32 accumulation, f32 bias add.
        return jnp.dot(a.astype(MATMUL_DTYPE), w, preferred_element_type=f32) + b

    # ---- encoder: Linear->Tanh->Linear->Tanh, fused mu/log-sigma head ----
    h1 = jnp.tanh(mm(x_ref[...], wpack_ref[_R_W1:_R_W2, :],
                     bpack_ref[:, _C_B1:_C_B2]))
    h2 = jnp.tanh(mm(h1, wpack_ref[_R_W2:_R_WH, :],
                     bpack_ref[:, _C_B2:_C_BH]))
    head = mm(h2, wpack_ref[_R_WH:_R_W3, :], bpack_ref[:, _C_BH:_C_B3])  # (TB, 2Z)
    z_mu = head[:, :Z_DIM]
    s = head[:, Z_DIM:]                       # pre-exp log-scale
    z_sigma = jnp.exp(s)

    # ---- reparameterized sample  z ~ N(z_mu, (z_sigma + eps)^2) ----
    z = z_mu + (z_sigma + EPS) * noise_ref[...]

    # ---- decoder: Linear->Tanh->Linear->Tanh->Linear (logit difference) ----
    d1 = jnp.tanh(mm(z, wpack_ref[_R_W3:_R_W4, :], bpack_ref[:, _C_B3:_C_B4]))
    d2 = jnp.tanh(mm(d1, wpack_ref[_R_W4:_R_END, :], bpack_ref[:, _C_B4:_C_BD]))
    diff = mm(d2, wd_ref[...], bpack_ref[:, _C_BD:_C_END])   # (TB, D): l1 - l0

    # ---- Categorical(2 classes).log_prob(x) = -softplus((1-2x)*(l1-l0)) ----
    # x re-read here (bf16 {0,1}, already in the VMEM input buffer) to keep
    # its live range short; the cast to f32 is exact for 0/1 values.
    t = (1.0 - 2.0 * x_ref[...].astype(f32)) * diff
    sp = jnp.maximum(t, 0.0) + jnp.log1p(jnp.exp(-jnp.abs(t)))
    recon = -jnp.sum(sp, axis=1)              # (TB,)

    # ---- analytic KL term (sgvb2), using pre-exp s (log(exp(s)) == s) ----
    kl = 0.5 * jnp.sum(1.0 + 2.0 * s - z_mu * z_mu - z_sigma * z_sigma, axis=1)

    out_ref[...] = (recon + kl)[None, :]      # lane-dense (1, TB) write


def _pick_tb(batch):
    # Target 512-row tiles (amortize per-step overhead on the serial grid of
    # v5e/v6e's single TensorCore) but keep at least 2 balanced grid steps so
    # both v7x TensorCores get work; always a multiple of 128.
    half = -(-batch // 2)                     # ceil(B/2)
    return max(128, min(512, ((half + 127) // 128) * 128))


def vae_elbo_pallas(x_flat, noise, kp, *, tb=None):
    """x_flat: (B, D) binary {0,1}; noise: (B, Z) f32; returns (B,) f32 elbo."""
    B = x_flat.shape[0]
    if tb is None:
        tb = _pick_tb(B)
    assert tb % 128 == 0, "tb must be a multiple of 128 (MXU rows / lane-dense out)"
    Bp = ((B + tb - 1) // tb) * tb

    x_flat = x_flat.astype(MATMUL_DTYPE)      # {0,1} exact in bf16; halves x DMA
    noise = noise.astype(jnp.float32)
    if Bp != B:  # pad batch; padded rows are discarded after the call
        x_flat = jnp.pad(x_flat, ((0, Bp - B), (0, 0)))
        noise = jnp.pad(noise, ((0, Bp - B), (0, 0)))

    wpack, wd, bpack = kp["wpack"], kp["wd"], kp["bpack"]

    in_specs = [
        pl.BlockSpec((tb, D), lambda i: (i, 0)),        # x (bf16)
        pl.BlockSpec((tb, Z_DIM), lambda i: (i, 0)),    # noise (f32)
        pl.BlockSpec(wpack.shape, lambda i: (0, 0)),    # resident packed weights
        pl.BlockSpec(wd.shape, lambda i: (0, 0)),       # resident logit-diff weight
        pl.BlockSpec(bpack.shape, lambda i: (0, 0)),    # resident packed biases
    ]

    out = pl.pallas_call(
        _vae_kernel,
        out_shape=jax.ShapeDtypeStruct((1, Bp), jnp.float32),
        grid=(Bp // tb,),
        in_specs=in_specs,
        out_specs=pl.BlockSpec((1, tb), lambda i: (0, i)),
        compiler_params=pltpu.CompilerParams(dimension_semantics=("parallel",)),
    )(x_flat, noise, wpack, wd, bpack)
    return out.reshape(Bp)[:B]


# ----------------------------- parameters -----------------------------------

def _linear_init(key, fan_in, fan_out):
    # PyTorch nn.Linear default: U(-1/sqrt(fan_in), 1/sqrt(fan_in))
    kw, kb = jax.random.split(key)
    bound = 1.0 / jnp.sqrt(jnp.float32(fan_in))
    w = jax.random.uniform(kw, (fan_in, fan_out), jnp.float32, -bound, bound)
    b = jax.random.uniform(kb, (1, fan_out), jnp.float32, -bound, bound)
    return w, b


def make_params(key):
    """PyTorch-layout f32 parameters (reference parameterization)."""
    ks = jax.random.split(key, 7)
    p = {}
    p["w1"], p["b1"] = _linear_init(ks[0], D, H_DIM)
    p["w2"], p["b2"] = _linear_init(ks[1], H_DIM, H_DIM)
    p["wmu"], p["bmu"] = _linear_init(ks[2], H_DIM, Z_DIM)
    p["ws"], p["bs"] = _linear_init(ks[3], H_DIM, Z_DIM)
    p["w3"], p["b3"] = _linear_init(ks[4], Z_DIM, H_DIM)
    p["w4"], p["b4"] = _linear_init(ks[5], H_DIM, H_DIM)
    # final layer: 2*D columns, interleaved (pixel, class) like torch reshape
    p["w5"], p["b5"] = _linear_init(ks[6], H_DIM, 2 * D)
    return p


def pack_kernel_params(p, matmul_dtype=MATMUL_DTYPE):
    """Kernel-ready params: fused mu/sigma head, class-logit difference, and
    all invariant inputs packed into 3 arrays (wpack/wd bf16, bpack f32)."""
    assert 2 * Z_DIM == H_DIM, "row-stacked wpack layout assumes 2*Z == H"
    wh = jnp.concatenate([p["wmu"], p["ws"]], axis=1)      # (H, 2Z)
    bh = jnp.concatenate([p["bmu"], p["bs"]], axis=1)      # (1, 2Z)
    wd = p["w5"][:, 1::2] - p["w5"][:, 0::2]               # (H, D): class1 - class0
    bd = p["b5"][:, 1::2] - p["b5"][:, 0::2]               # (1, D)
    wpack = jnp.concatenate([p["w1"], p["w2"], wh, p["w3"], p["w4"]],
                            axis=0).astype(matmul_dtype)   # (480, 64)
    bpack = jnp.concatenate([p["b1"], p["b2"], bh, p["b3"], p["b4"], bd],
                            axis=1)                        # (1, 576) f32
    assert wpack.shape == (_R_END, H_DIM)
    assert bpack.shape == (1, _C_END)
    return {"wpack": wpack, "wd": wd.astype(matmul_dtype), "bpack": bpack}


# ----------------------------- reference ------------------------------------

def vae_elbo_ref(x_flat, noise, p):
    """Plain-JAX f32 reference matching the PyTorch forward (mode='sgvb2')."""
    h1 = jnp.tanh(x_flat @ p["w1"] + p["b1"])
    h2 = jnp.tanh(h1 @ p["w2"] + p["b2"])
    z_mu = h2 @ p["wmu"] + p["bmu"]
    z_sigma = jnp.exp(h2 @ p["ws"] + p["bs"])
    z = z_mu + (z_sigma + EPS) * noise
    d1 = jnp.tanh(z @ p["w3"] + p["b3"])
    d2 = jnp.tanh(d1 @ p["w4"] + p["b4"])
    logits = (d2 @ p["w5"] + p["b5"]).reshape(-1, D, 2)
    l0, l1 = logits[..., 0], logits[..., 1]
    lse = jnp.logaddexp(l0, l1)
    sel = jnp.where(x_flat > 0.5, l1, l0)
    recon = jnp.sum(sel - lse, axis=1)
    kl = 0.5 * jnp.sum(1.0 + 2.0 * jnp.log(z_sigma) - z_mu ** 2 - z_sigma ** 2, axis=1)
    return recon + kl


if __name__ == "__main__":
    key = jax.random.PRNGKey(0)
    k_param, k_x, k_noise = jax.random.split(key, 3)

    B = 256                       # auto tile -> 2 grid steps (both v7x TCs busy)
    C, Hh, Ww = IM_SHAPE
    # Binary image input (Categorical with 2 classes expects x in {0, 1}).
    x_nchw = jax.random.bernoulli(k_x, 0.5, (B, C, Hh, Ww)).astype(jnp.float32)
    x_flat = x_nchw.reshape(B, D)
    noise = jax.random.normal(k_noise, (B, Z_DIM), jnp.float32)

    params = make_params(k_param)
    kparams = pack_kernel_params(params)

    elbo = vae_elbo_pallas(x_flat, noise, kparams)
    jax.block_until_ready(elbo)

    ref = vae_elbo_ref(x_flat, noise, params)
    assert elbo.shape == (B,)
    assert bool(jnp.all(jnp.isfinite(elbo)))
    # bf16 matmul operands -> slightly loosened tolerance vs. the f32 reference.
    assert jnp.allclose(elbo, ref, rtol=2e-2, atol=0.5), (elbo[:4], ref[:4])

    print("KERNEL_OK")
</pallas_src>

<mosaic_0001>
module attributes {stable_mosaic.version = 11 : i64} {
  func.func @_vae_kernel(%arg0: i32, %arg1: memref<128x256xbf16, #tpu.memory_space<vmem>>, %arg2: memref<128x32xf32, #tpu.memory_space<vmem>>, %arg3: memref<480x64xbf16, #tpu.memory_space<vmem>>, %arg4: memref<64x256xbf16, #tpu.memory_space<vmem>>, %arg5: memref<1x576xf32, #tpu.memory_space<vmem>>, %arg6: memref<1x128xf32, #tpu.memory_space<vmem>>) attributes {dimension_semantics = [#tpu.dimension_semantics<parallel>], iteration_bounds = array<i64: 2>, scalar_prefetch = 0 : i64, scratch_operands = 0 : i64, tpu.core_type = #tpu.core_type<tc>, window_params = [{transform_indices = @transform_0, window_bounds = array<i64: 128, 256>}, {transform_indices = @transform_1, window_bounds = array<i64: 128, 32>}, {pipeline_mode = #tpu.pipeline_mode<synchronous>, transform_indices = @transform_2, window_bounds = array<i64: 480, 64>}, {pipeline_mode = #tpu.pipeline_mode<synchronous>, transform_indices = @transform_3, window_bounds = array<i64: 64, 256>}, {pipeline_mode = #tpu.pipeline_mode<synchronous>, transform_indices = @transform_4, window_bounds = array<i64: 1, 576>}, {transform_indices = @transform_5, window_bounds = array<i64: 1, 128>}]} {
    %c0 = arith.constant 0 : index
    %c0_0 = arith.constant 0 : index
    %0 = vector.load %arg1[%c0, %c0_0] : memref<128x256xbf16, #tpu.memory_space<vmem>>, vector<128x256xbf16>
    %c0_1 = arith.constant 0 : index
    %c0_2 = arith.constant 0 : index
    %1 = vector.load %arg3[%c0_1, %c0_2] : memref<480x64xbf16, #tpu.memory_space<vmem>>, vector<256x64xbf16>
    %c0_3 = arith.constant 0 : index
    %c0_4 = arith.constant 0 : index
    %2 = vector.load %arg5[%c0_3, %c0_4] : memref<1x576xf32, #tpu.memory_space<vmem>>, vector<1x64xf32>
    %cst = arith.constant dense<0.000000e+00> : vector<128x64xf32>
    %3 = tpu.matmul %0, %1, %cst {dimension_numbers = #tpu.dot_dimension_numbers<[1], [0], [0], [1], [0, 0, 1, 1], [], []>} : vector<128x256xbf16>, vector<256x64xbf16>, vector<128x64xf32> -> vector<128x64xf32>
    %4 = vector.broadcast %2 : vector<1x64xf32> to vector<128x64xf32>
    %5 = arith.addf %3, %4 : vector<128x64xf32>
    %6 = math.tanh %5 : vector<128x64xf32>
    %c256 = arith.constant 256 : index
    %c0_5 = arith.constant 0 : index
    %7 = vector.load %arg3[%c256, %c0_5] : memref<480x64xbf16, #tpu.memory_space<vmem>>, vector<64x64xbf16>
    %c0_6 = arith.constant 0 : index
    %c64 = arith.constant 64 : index
    %8 = vector.load %arg5[%c0_6, %c64] : memref<1x576xf32, #tpu.memory_space<vmem>>, vector<1x64xf32>
    %9 = arith.truncf %6 : vector<128x64xf32> to vector<128x64xbf16>
    %cst_7 = arith.constant dense<0.000000e+00> : vector<128x64xf32>
    %10 = tpu.matmul %9, %7, %cst_7 {dimension_numbers = #tpu.dot_dimension_numbers<[1], [0], [0], [1], [0, 0, 1, 1], [], []>} : vector<128x64xbf16>, vector<64x64xbf16>, vector<128x64xf32> -> vector<128x64xf32>
    %11 = vector.broadcast %8 : vector<1x64xf32> to vector<128x64xf32>
    %12 = arith.addf %10, %11 : vector<128x64xf32>
    %13 = math.tanh %12 : vector<128x64xf32>
    %c320 = arith.constant 320 : index
    %c0_8 = arith.constant 0 : index
    %14 = vector.load %arg3[%c320, %c0_8] : memref<480x64xbf16, #tpu.memory_space<vmem>>, vector<64x64xbf16>
    %c0_9 = arith.constant 0 : index
    %c128 = arith.constant 128 : index
    %15 = vector.load %arg5[%c0_9, %c128] : memref<1x576xf32, #tpu.memory_space<vmem>>, vector<1x64xf32>
    %16 = arith.truncf %13 : vector<128x64xf32> to vector<128x64xbf16>
    %cst_10 = arith.constant dense<0.000000e+00> : vector<128x64xf32>
    %17 = tpu.matmul %16, %14, %cst_10 {dimension_numbers = #tpu.dot_dimension_numbers<[1], [0], [0], [1], [0, 0, 1, 1], [], []>} : vector<128x64xbf16>, vector<64x64xbf16>, vector<128x64xf32> -> vector<128x64xf32>
    %18 = vector.broadcast %15 : vector<1x64xf32> to vector<128x64xf32>
    %19 = arith.addf %17, %18 : vector<128x64xf32>
    %20 = vector.extract_strided_slice %19 {offsets = [0, 0], sizes = [128, 32], strides = [1, 1]} : vector<128x64xf32> to vector<128x32xf32>
    %21 = vector.extract_strided_slice %19 {offsets = [0, 32], sizes = [128, 32], strides = [1, 1]} : vector<128x64xf32> to vector<128x32xf32>
    %22 = math.exp %21 : vector<128x32xf32>
    %cst_11 = arith.constant 9.99999974E-5 : f32
    %23 = vector.broadcast %cst_11 : f32 to vector<128x32xf32>
    %24 = arith.addf %22, %23 : vector<128x32xf32>
    %c0_12 = arith.constant 0 : index
    %c0_13 = arith.constant 0 : index
    %25 = vector.load %arg2[%c0_12, %c0_13] : memref<128x32xf32, #tpu.memory_space<vmem>>, vector<128x32xf32>
    %26 = arith.mulf %24, %25 : vector<128x32xf32>
    %27 = arith.addf %20, %26 : vector<128x32xf32>
    %c384 = arith.constant 384 : index
    %c0_14 = arith.constant 0 : index
    %28 = vector.load %arg3[%c384, %c0_14] : memref<480x64xbf16, #tpu.memory_space<vmem>>, vector<32x64xbf16>
    %c0_15 = arith.constant 0 : index
    %c192 = arith.constant 192 : index
    %29 = vector.load %arg5[%c0_15, %c192] : memref<1x576xf32, #tpu.memory_space<vmem>>, vector<1x64xf32>
    %30 = arith.truncf %27 : vector<128x32xf32> to vector<128x32xbf16>
    %cst_16 = arith.constant dense<0.000000e+00> : vector<128x64xf32>
    %31 = tpu.matmul %30, %28, %cst_16 {dimension_numbers = #tpu.dot_dimension_numbers<[1], [0], [0], [1], [0, 0, 1, 1], [], []>} : vector<128x32xbf16>, vector<32x64xbf16>, vector<128x64xf32> -> vector<128x64xf32>
    %32 = vector.broadcast %29 : vector<1x64xf32> to vector<128x64xf32>
    %33 = arith.addf %31, %32 : vector<128x64xf32>
    %34 = math.tanh %33 : vector<128x64xf32>
    %c416 = arith.constant 416 : index
    %c0_17 = arith.constant 0 : index
    %35 = vector.load %arg3[%c416, %c0_17] : memref<480x64xbf16, #tpu.memory_space<vmem>>, vector<64x64xbf16>
    %c0_18 = arith.constant 0 : index
    %c256_19 = arith.constant 256 : index
    %36 = vector.load %arg5[%c0_18, %c256_19] : memref<1x576xf32, #tpu.memory_space<vmem>>, vector<1x64xf32>
    %37 = arith.truncf %34 : vector<128x64xf32> to vector<128x64xbf16>
    %cst_20 = arith.constant dense<0.000000e+00> : vector<128x64xf32>
    %38 = tpu.matmul %37, %35, %cst_20 {dimension_numbers = #tpu.dot_dimension_numbers<[1], [0], [0], [1], [0, 0, 1, 1], [], []>} : vector<128x64xbf16>, vector<64x64xbf16>, vector<128x64xf32> -> vector<128x64xf32>
    %39 = vector.broadcast %36 : vector<1x64xf32> to vector<128x64xf32>
    %40 = arith.addf %38, %39 : vector<128x64xf32>
    %41 = math.tanh %40 : vector<128x64xf32>
    %c0_21 = arith.constant 0 : index
    %c0_22 = arith.constant 0 : index
    %42 = vector.load %arg4[%c0_21, %c0_22] : memref<64x256xbf16, #tpu.memory_space<vmem>>, vector<64x256xbf16>
    %c0_23 = arith.constant 0 : index
    %c320_24 = arith.constant 320 : index
    %43 = vector.load %arg5[%c0_23, %c320_24] : memref<1x576xf32, #tpu.memory_space<vmem>>, vector<1x256xf32>
    %44 = arith.truncf %41 : vector<128x64xf32> to vector<128x64xbf16>
    %cst_25 = arith.constant dense<0.000000e+00> : vector<128x256xf32>
    %45 = tpu.matmul %44, %42, %cst_25 {dimension_numbers = #tpu.dot_dimension_numbers<[1], [0], [0], [1], [0, 0, 1, 1], [], []>} : vector<128x64xbf16>, vector<64x256xbf16>, vector<128x256xf32> -> vector<128x256xf32>
    %46 = vector.broadcast %43 : vector<1x256xf32> to vector<128x256xf32>
    %47 = arith.addf %45, %46 : vector<128x256xf32>
    %c0_26 = arith.constant 0 : index
    %c0_27 = arith.constant 0 : index
    %48 = vector.load %arg1[%c0_26, %c0_27] : memref<128x256xbf16, #tpu.memory_space<vmem>>, vector<128x256xbf16>
    %49 = arith.extf %48 : vector<128x256xbf16> to vector<128x256xf32>
    %cst_28 = arith.constant 2.000000e+00 : f32
    %50 = vector.broadcast %cst_28 : f32 to vector<128x256xf32>
    %51 = arith.mulf %50, %49 : vector<128x256xf32>
    %cst_29 = arith.constant 1.000000e+00 : f32
    %52 = vector.broadcast %cst_29 : f32 to vector<128x256xf32>
    %53 = arith.subf %52, %51 : vector<128x256xf32>
    %54 = arith.mulf %53, %47 : vector<128x256xf32>
    %cst_30 = arith.constant 0.000000e+00 : f32
    %55 = vector.broadcast %cst_30 : f32 to vector<128x256xf32>
    %56 = arith.maximumf %54, %55 : vector<128x256xf32>
    %57 = math.absf %54 : vector<128x256xf32>
    %cst_31 = arith.constant 0.000000e+00 : f32
    %58 = vector.broadcast %cst_31 : f32 to vector<128x256xf32>
    %59 = arith.subf %58, %57 : vector<128x256xf32>
    %60 = math.exp %59 : vector<128x256xf32>
    %61 = math.log1p %60 : vector<128x256xf32>
    %62 = arith.addf %56, %61 : vector<128x256xf32>
    %cst_32 = arith.constant dense<0.000000e+00> : vector<128xf32>
    %63 = vector.multi_reduction <add>, %62, %cst_32 [1] : vector<128x256xf32> to vector<128xf32>
    %cst_33 = arith.constant 0.000000e+00 : f32
    %64 = vector.broadcast %cst_33 : f32 to vector<128xf32>
    %65 = arith.subf %64, %63 : vector<128xf32>
    %cst_34 = arith.constant 2.000000e+00 : f32
    %66 = vector.broadcast %cst_34 : f32 to vector<128x32xf32>
    %67 = arith.mulf %66, %21 : vector<128x32xf32>
    %cst_35 = arith.constant 1.000000e+00 : f32
    %68 = vector.broadcast %cst_35 : f32 to vector<128x32xf32>
    %69 = arith.addf %68, %67 : vector<128x32xf32>
    %70 = arith.mulf %20, %20 : vector<128x32xf32>
    %71 = arith.subf %69, %70 : vector<128x32xf32>
    %72 = arith.mulf %22, %22 : vector<128x32xf32>
    %73 = arith.subf %71, %72 : vector<128x32xf32>
    %cst_36 = arith.constant dense<0.000000e+00> : vector<128xf32>
    %74 = vector.multi_reduction <add>, %73, %cst_36 [1] : vector<128x32xf32> to vector<128xf32>
    %cst_37 = arith.constant 5.000000e-01 : f32
    %75 = vector.broadcast %cst_37 : f32 to vector<128xf32>
    %76 = arith.mulf %75, %74 : vector<128xf32>
    %77 = arith.addf %65, %76 : vector<128xf32>
    %78 = vector.shape_cast %77 : vector<128xf32> to vector<1x128xf32>
    %c0_38 = arith.constant 0 : index
    %c0_39 = arith.constant 0 : index
    %79 = vector.load %arg6[%c0_38, %c0_39] : memref<1x128xf32, #tpu.memory_space<vmem>>, vector<1x128xf32>
    tpu.vector_store %arg6[%c0_38, %c0_39], %78 {strides = array<i32>} : memref<1x128xf32, #tpu.memory_space<vmem>>, vector<1x128xf32>,
    return
  }
  func.func @transform_0(%arg0: i32) -> (i32, i32) {
    %c0_i32 = arith.constant 0 : i32
    %c0_i32_0 = arith.constant 0 : i32
    return %arg0, %c0_i32 : i32, i32
  }
  func.func @transform_1(%arg0: i32) -> (i32, i32) {
    %c0_i32 = arith.constant 0 : i32
    %c0_i32_0 = arith.constant 0 : i32
    return %arg0, %c0_i32 : i32, i32
  }
  func.func @transform_2(%arg0: i32) -> (i32, i32) {
    %c0_i32 = arith.constant 0 : i32
    %c0_i32_0 = arith.constant 0 : i32
    %c0_i32_1 = arith.constant 0 : i32
    return %c0_i32, %c0_i32_0 : i32, i32
  }
  func.func @transform_3(%arg0: i32) -> (i32, i32) {
    %c0_i32 = arith.constant 0 : i32
    %c0_i32_0 = arith.constant 0 : i32
    %c0_i32_1 = arith.constant 0 : i32
    return %c0_i32, %c0_i32_0 : i32, i32
  }
  func.func @transform_4(%arg0: i32) -> (i32, i32) {
    %c0_i32 = arith.constant 0 : i32
    %c0_i32_0 = arith.constant 0 : i32
    %c0_i32_1 = arith.constant 0 : i32
    return %c0_i32, %c0_i32_0 : i32, i32
  }
  func.func @transform_5(%arg0: i32) -> (i32, i32) {
    %c0_i32 = arith.constant 0 : i32
    %c0_i32_0 = arith.constant 0 : i32
    return %c0_i32, %arg0 : i32, i32
  }
}

</mosaic_0001>

<llo_original>
// kernel: tpu_custom_call.1
$region0: #{tpu_custom_call.1}
  #allocation0 [shape = 'u32[]', space=smem, size = 0x4, offset = 0x4, fixed_abs, tag = 'smem constant byte address 0x4 - core index']
  #allocation1 [shape = 'u32[144,128]{1,0:T(1,128)}', space=vmem, size = 0x12000, scoped, tag = 'internal scratch']
  %s0 = inlined_call_operand.vmem [shape: bf16[256,256], index: 0, kind: input, shape index: {}]
  %s1 = inlined_call_operand.vmem [shape: f32[256,32], index: 1, kind: input, shape index: {}]
  %s2 = inlined_call_operand.vmem [shape: bf16[480,64], index: 2, kind: input, shape index: {}]
  %s3 = inlined_call_operand.vmem [shape: bf16[64,256], index: 3, kind: input, shape index: {}]
  %s4 = inlined_call_operand.vmem [shape: f32[1,576], index: 4, kind: input, shape index: {}]
  %s5 = inlined_call_operand.hbm [shape: f32[1,256], index: 5, kind: output, shape index: {}]
  %s6 = sld [smem:[#allocation0]]
  $region53: #{tpu_custom_call.1} parent=0
    _
  %s8 = ssub.s32 1, %s6
  %s9 = scalar_select 0, %s8, %s6
  $region1: #{tpu_custom_call.1} parent=0
    #allocation2 [shape = 'u8[1024]{0}', space=vmem, size = 0x400, scoped, tag = 'output window, operand 0']
    #allocation3 [shape = 's32[2]{0}', space=sflag, size = 0x8, scoped, tag = 'scoped memory for tpu_custom_call.1']
    %10 = vsyncpa [#allocation3], 0
    %s11 = scalar_lea.sflag [#allocation3], 1
    %12 = vsyncpa %s11, 0
    loop: start=0, step=1, limit=4
    $region2: #{tpu_custom_call.1} parent=1 // loop_pre_header
      _
    $region3: #{tpu_custom_call.1} parent=1 // loop_header
      %s14 = sphi 0, %s18
      %p15 = scmp.ge.s32.totalorder %s14, 4
      %s24 = sphi 0, %s26
      %s27 = sphi 0, %s24
      %s28 = sphi 0, %s27
      %s44 = sphi 0, %s28
      %s50 = sphi 0, %s52
      %s53 = sphi 0, %s50
      %s54 = sphi 0, %s53
      %s70 = sphi 0, %s54
      %s74 = sphi 0, %s74
      %s76 = sphi 0, %s74
      %s77 = sphi 0, %s76
      %s91 = sphi 0, %s77
      %s95 = sphi 0, %s95
      %s97 = sphi 0, %s95
      %s98 = sphi 0, %s97
      %s112 = sphi 0, %s98
      %s116 = sphi 0, %s116
      %s118 = sphi 0, %s116
      %s119 = sphi 0, %s118
      %s133 = sphi 0, %s119
      %s139 = sphi 0, %s141
      %s142 = sphi 0, %s139
      %s143 = sphi 0, %s142
      %s159 = sphi 0, %s143
    $region4: #{tpu_custom_call.1} parent=1 // loop_header_branch
      %17 = sbr.rel (%p15) target = $region8
    $region5: #{tpu_custom_call.1} parent=1 // loop_body
      %s19 = ssub.s32 %s14, 1
      %s20 = ssub.s32 %s14, 2
      %s21 = sadd.s32 %s14, 1
      %s22 = ssub.s32 %s14, %s21
      %p23 = scmp.eq.s32.totalorder %s22, 0
      %s25 = sadd.s32 %s24, 1
      %s26 = scalar_select %p23, %s24, %s25
      %p29 = pneg %p23
      %p30 = scmp.eq.s32.totalorder %s14, 1
      %p31 = por %p29, %p30
      %p32 = scmp.ne.s32.totalorder %s24, %s27
      %p33 = scmp.eq.s32.totalorder %s14, 0
      %p34 = por %p32, %p33
      %p35 = scmp.ne.s32.totalorder %s24, %s27
      %p36 = scmp.eq.s32.totalorder %s19, 1
      %p37 = por %p35, %p36
      %p38 = scmp.ne.s32.totalorder %s27, %s28
      %p39 = scmp.eq.s32.totalorder %s19, 0
      %p40 = por %p38, %p39
      %p41 = scmp.ne.s32.totalorder %s27, %s28
      %p42 = scmp.eq.s32.totalorder %s20, 1
      %p43 = por %p41, %p42
      %p45 = scmp.ne.s32.totalorder %s28, %s44
      %p46 = scmp.eq.s32.totalorder %s20, 0
      %p47 = por %p45, %p46
      %s48 = ssub.s32 %s14, %s21
      %p49 = scmp.eq.s32.totalorder %s48, 0
      %s51 = sadd.s32 %s50, 1
      %s52 = scalar_select %p49, %s50, %s51
      %p55 = pneg %p49
      %p56 = scmp.eq.s32.totalorder %s14, 1
      %p57 = por %p55, %p56
      %p58 = scmp.ne.s32.totalorder %s50, %s53
      %p59 = scmp.eq.s32.totalorder %s14, 0
      %p60 = por %p58, %p59
      %p61 = scmp.ne.s32.totalorder %s50, %s53
      %p62 = scmp.eq.s32.totalorder %s19, 1
      %p63 = por %p61, %p62
      %p64 = scmp.ne.s32.totalorder %s53, %s54
      %p65 = scmp.eq.s32.totalorder %s19, 0
      %p66 = por %p64, %p65
      %p67 = scmp.ne.s32.totalorder %s53, %s54
      %p68 = scmp.eq.s32.totalorder %s20, 1
      %p69 = por %p67, %p68
      %p71 = scmp.ne.s32.totalorder %s54, %s70
      %p72 = scmp.eq.s32.totalorder %s20, 0
      %p73 = por %p71, %p72
      %s75 = sadd.s32 %s74, 1
      %p78 = scmp.eq.s32.totalorder %s14, 1
      %p79 = scmp.ne.s32.totalorder %s74, %s76
      %p80 = scmp.eq.s32.totalorder %s14, 0
      %p81 = por %p79, %p80
      %p82 = scmp.ne.s32.totalorder %s74, %s76
      %p83 = scmp.eq.s32.totalorder %s19, 1
      %p84 = por %p82, %p83
      %p85 = scmp.ne.s32.totalorder %s76, %s77
      %p86 = scmp.eq.s32.totalorder %s19, 0
      %p87 = por %p85, %p86
      %p88 = scmp.ne.s32.totalorder %s76, %s77
      %p89 = scmp.eq.s32.totalorder %s20, 1
      %p90 = por %p88, %p89
      %p92 = scmp.ne.s32.totalorder %s77, %s91
      %p93 = scmp.eq.s32.totalorder %s20, 0
      %p94 = por %p92, %p93
      %s96 = sadd.s32 %s95, 1
      %p99 = scmp.eq.s32.totalorder %s14, 1
      %p100 = scmp.ne.s32.totalorder %s95, %s97
      %p101 = scmp.eq.s32.totalorder %s14, 0
      %p102 = por %p100, %p101
      %p103 = scmp.ne.s32.totalorder %s95, %s97
      %p104 = scmp.eq.s32.totalorder %s19, 1
      %p105 = por %p103, %p104
      %p106 = scmp.ne.s32.totalorder %s97, %s98
      %p107 = scmp.eq.s32.totalorder %s19, 0
      %p108 = por %p106, %p107
      %p109 = scmp.ne.s32.totalorder %s97, %s98
      %p110 = scmp.eq.s32.totalorder %s20, 1
      %p111 = por %p109, %p110
      %p113 = scmp.ne.s32.totalorder %s98, %s112
      %p114 = scmp.eq.s32.totalorder %s20, 0
      %p115 = por %p113, %p114
      %s117 = sadd.s32 %s116, 1
      %p120 = scmp.eq.s32.totalorder %s14, 1
      %p121 = scmp.ne.s32.totalorder %s116, %s118
      %p122 = scmp.eq.s32.totalorder %s14, 0
      %p123 = por %p121, %p122
      %p124 = scmp.ne.s32.totalorder %s116, %s118
      %p125 = scmp.eq.s32.totalorder %s19, 1
      %p126 = por %p124, %p125
      %p127 = scmp.ne.s32.totalorder %s118, %s119
      %p128 = scmp.eq.s32.totalorder %s19, 0
      %p129 = por %p127, %p128
      %p130 = scmp.ne.s32.totalorder %s118, %s119
      %p131 = scmp.eq.s32.totalorder %s20, 1
      %p132 = por %p130, %p131
      %p134 = scmp.ne.s32.totalorder %s119, %s133
      %p135 = scmp.eq.s32.totalorder %s20, 0
      %p136 = por %p134, %p135
      %s137 = ssub.s32 %s14, %s21
      %p138 = scmp.eq.s32.totalorder %s137, 0
      %s140 = sadd.s32 %s139, 1
      %s141 = scalar_select %p138, %s139, %s140
      %p144 = pneg %p138
      %p145 = scmp.eq.s32.totalorder %s14, 1
      %p146 = por %p144, %p145
      %p147 = scmp.ne.s32.totalorder %s139, %s142
      %p148 = scmp.eq.s32.totalorder %s14, 0
      %p149 = por %p147, %p148
      %p150 = scmp.ne.s32.totalorder %s139, %s142
      %p151 = scmp.eq.s32.totalorder %s19, 1
      %p152 = por %p150, %p151
      %p153 = scmp.ne.s32.totalorder %s142, %s143
      %p154 = scmp.eq.s32.totalorder %s19, 0
      %p155 = por %p153, %p154
      %p156 = scmp.ne.s32.totalorder %s142, %s143
      %p157 = scmp.eq.s32.totalorder %s20, 1
      %p158 = por %p156, %p157
      %p160 = scmp.ne.s32.totalorder %s143, %s159
      %p161 = scmp.eq.s32.totalorder %s20, 0
      %p162 = por %p160, %p161
      %p163 = scmp.le.s32.totalorder 1, %s14
      %p164 = scmp.lt.s32.totalorder %s14, 3
      %p165 = pnand %p163, %p164
      %p166 = pneg %p165
      // Predicated region
      $region9: #{tpu_custom_call.1} parent=5 // pred_check
        _
      $region10: #{tpu_custom_call.1} parent=5 // pred_check_branch
        %168 = sbr.rel (%p165) target = $region12
      $region11: #{tpu_custom_call.1} parent=5 // pred_region
        %s169 = ssub.s32 %s14, 1
        // Predicated region
        $region13: #{tpu_custom_call.1} parent=11 // pred_check
          %p170 = pneg %p87
        $region14: #{tpu_custom_call.1} parent=11 // pred_check_branch
          %172 = sbr.rel (%p170) target = $region16
        $region15: #{tpu_custom_call.1} parent=11 // pred_region
          _
        $region16: #{tpu_custom_call.1} parent=11 // pred_fallthru
          _
        // Predicated region
        $region17: #{tpu_custom_call.1} parent=11 // pred_check
          %p173 = pneg %p108
        $region18: #{tpu_custom_call.1} parent=11 // pred_check_branch
          %175 = sbr.rel (%p173) target = $region20
        $region19: #{tpu_custom_call.1} parent=11 // pred_region
          _
        $region20: #{tpu_custom_call.1} parent=11 // pred_fallthru
          _
        // Predicated region
        $region21: #{tpu_custom_call.1} parent=11 // pred_check
          %p176 = pneg %p129
        $region22: #{tpu_custom_call.1} parent=11 // pred_check_branch
          %178 = sbr.rel (%p176) target = $region24
        $region23: #{tpu_custom_call.1} parent=11 // pred_region
          _
        $region24: #{tpu_custom_call.1} parent=11 // pred_fallthru
          _
      $region12: #{tpu_custom_call.1} parent=5 // pred_fallthru
        _
      %p179 = scmp.lt.s32.totalorder %s14, 2
      // Predicated region
      $region25: #{tpu_custom_call.1} parent=5 // pred_check
        %p180 = pneg %p179
      $region26: #{tpu_custom_call.1} parent=5 // pred_check_branch
        %182 = sbr.rel (%p180) target = $region28
      $region27: #{tpu_custom_call.1} parent=5 // pred_region
        // Predicated region
        $region29: #{tpu_custom_call.1} parent=27 // pred_check
          %p183 = pneg %p34
        $region30: #{tpu_custom_call.1} parent=27 // pred_check_branch
          %185 = sbr.rel (%p183) target = $region32
        $region31: #{tpu_custom_call.1} parent=27 // pred_region
          %s186 = smul.u32 16, %s14
          %p187 = scmp.lt.s32.totalorder %s186, 31
          %s188 = scalar_select %p187, %s186, 31
          %s189 = smul.addr %s188, 2
          %s190 = smul.addr %s189, 4
          %s191 = scalar_lea.vmem %s0, %s190
          %s192 = smul.u32 16, %s14
        $region32: #{tpu_custom_call.1} parent=27 // pred_fallthru
          _
        // Predicated region
        $region33: #{tpu_custom_call.1} parent=27 // pred_check
          %p193 = pneg %p60
        $region34: #{tpu_custom_call.1} parent=27 // pred_check_branch
          %195 = sbr.rel (%p193) target = $region36
        $region35: #{tpu_custom_call.1} parent=27 // pred_region
          %s196 = smul.u32 16, %s14
          %p197 = scmp.lt.s32.totalorder %s196, 31
          %s198 = scalar_select %p197, %s196, 31
          %s199 = smul.addr %s198, 8
          %s200 = scalar_lea.vmem %s1, %s199
          %s201 = smul.u32 16, %s14
        $region36: #{tpu_custom_call.1} parent=27 // pred_fallthru
          _
      $region28: #{tpu_custom_call.1} parent=5 // pred_fallthru
        _
      %p202 = scmp.le.s32.totalorder 1, %s14
      %p203 = scmp.lt.s32.totalorder %s14, 3
      %p204 = pnand %p202, %p203
      %p205 = pneg %p204
      // Predicated region
      $region37: #{tpu_custom_call.1} parent=5 // pred_check
        _
      $region38: #{tpu_custom_call.1} parent=5 // pred_check_branch
        %207 = sbr.rel (%p204) target = $region40
      $region39: #{tpu_custom_call.1} parent=5 // pred_region
        %s208 = ssub.s32 %s14, 1
        %s209 = smul.u32 16, %s19
        %p210 = scmp.lt.s32.totalorder %s209, 31
        %s211 = scalar_select %p210, %s209, 31
        %s212 = smul.addr %s211, 2
        %s213 = smul.addr %s212, 4
        %s214 = scalar_lea.vmem %s0, %s213
        %p215 = pneg %p40
        %p216 = pneg %p37
        %s217 = smul.u32 16, %s19
        %p218 = scmp.lt.s32.totalorder %s217, 31
        %s219 = scalar_select %p218, %s217, 31
        %s220 = smul.addr %s219, 8
        %s221 = scalar_lea.vmem %s1, %s220
        %p222 = pneg %p66
        %p223 = pneg %p63
        %p224 = pneg %p87
        %p225 = pneg %p84
        %p226 = pneg %p108
        %p227 = pneg %p105
        %p228 = pneg %p129
        %p229 = pneg %p126
        %p230 = pneg %p155
        %p231 = pneg %p152
        %s232 = sand.u32 %s142, 1
        %s233 = scalar_lea.sflag [#allocation3], %s232
        %s234 = sand.u32 %s142, 1
        %s235 = scalar_lea.vmem [#allocation2], %s234
        %s236 = smul.u32 16, %s19
        %p237 = scmp.lt.s32.totalorder %s236, 31
        %s238 = scalar_select %p237, %s236, 31
        %s239 = smul.addr %s238, 2
        %s240 = smul.addr %s239, 4
        %s241 = scalar_lea.vmem %s0, %s240
        %s242 = smul.u32 16, %s19
        %s243 = smul.u32 16, %s19
        %p244 = scmp.lt.s32.totalorder %s243, 31
        %s245 = scalar_select %p244, %s243, 31
        %s246 = smul.addr %s245, 8
        %s247 = scalar_lea.vmem %s1, %s246
        %s248 = smul.u32 16, %s19
        %v250 = vld [vmem:[%s241] sm:$0xff]
        %v251 = vld [vmem:[%s241 + $0x8] sm:$0xff]
        %v252 = vld [vmem:[%s241 + $0x10] sm:$0xff]
        %v253 = vld [vmem:[%s241 + $0x18] sm:$0xff]
        %v254 = vld [vmem:[%s241 + $0x20] sm:$0xff]
        %v255 = vld [vmem:[%s241 + $0x28] sm:$0xff]
        %v256 = vld [vmem:[%s241 + $0x30] sm:$0xff]
        %v257 = vld [vmem:[%s241 + $0x38] sm:$0xff]
        %v258 = vld [vmem:[%s241 + $0x40] sm:$0xff]
        %v259 = vld [vmem:[%s241 + $0x48] sm:$0xff]
        %v260 = vld [vmem:[%s241 + $0x50] sm:$0xff]
        %v261 = vld [vmem:[%s241 + $0x58] sm:$0xff]
        %v262 = vld [vmem:[%s241 + $0x60] sm:$0xff]
        %v263 = vld [vmem:[%s241 + $0x68] sm:$0xff]
        %v264 = vld [vmem:[%s241 + $0x70] sm:$0xff]
        %v265 = vld [vmem:[%s241 + $0x78] sm:$0xff]
        %v266 = vld [vmem:[%s2] sm:$0xf]
        %v267 = vld [vmem:[%s2 + $0x4] sm:$0xf]
        %v268 = vld [vmem:[%s2 + $0x8] sm:$0xf]
        %v269 = vld [vmem:[%s2 + $0xc] sm:$0xf]
        %v270 = vld [vmem:[%s2 + $0x10] sm:$0xf]
        %v271 = vld [vmem:[%s2 + $0x14] sm:$0xf]
        %v272 = vld [vmem:[%s2 + $0x18] sm:$0xf]
        %v273 = vld [vmem:[%s2 + $0x1c] sm:$0xf]
        %v274 = vld [vmem:[%s2 + $0x20] sm:$0xf]
        %v275 = vld [vmem:[%s2 + $0x24] sm:$0xf]
        %v276 = vld [vmem:[%s2 + $0x28] sm:$0xf]
        %v277 = vld [vmem:[%s2 + $0x2c] sm:$0xf]
        %v278 = vld [vmem:[%s2 + $0x30] sm:$0xf]
        %v279 = vld [vmem:[%s2 + $0x34] sm:$0xf]
        %v280 = vld [vmem:[%s2 + $0x38] sm:$0xf]
        %v281 = vld [vmem:[%s2 + $0x3c] sm:$0xf]
        %v282 = vld [vmem:[%s2 + $0x40] sm:$0xf]
        %v283 = vld [vmem:[%s2 + $0x44] sm:$0xf]
        %v284 = vld [vmem:[%s2 + $0x48] sm:$0xf]
        %v285 = vld [vmem:[%s2 + $0x4c] sm:$0xf]
        %v286 = vld [vmem:[%s2 + $0x50] sm:$0xf]
        %v287 = vld [vmem:[%s2 + $0x54] sm:$0xf]
        %v288 = vld [vmem:[%s2 + $0x58] sm:$0xf]
        %v289 = vld [vmem:[%s2 + $0x5c] sm:$0xf]
        %v290 = vld [vmem:[%s2 + $0x60] sm:$0xf]
        %v291 = vld [vmem:[%s2 + $0x64] sm:$0xf]
        %v292 = vld [vmem:[%s2 + $0x68] sm:$0xf]
        %v293 = vld [vmem:[%s2 + $0x6c] sm:$0xf]
        %v294 = vld [vmem:[%s2 + $0x70] sm:$0xf]
        %v295 = vld [vmem:[%s2 + $0x74] sm:$0xf]
        %v296 = vld [vmem:[%s2 + $0x78] sm:$0xf]
        %v297 = vld [vmem:[%s2 + $0x7c] sm:$0xf]
        %v298 = vld [vmem:[%s4] sm:$0x1]
        %v300 = vlaneseq
        %v301 = vshrl.u32 %v300, 7
        %v302 = vsub.s32 0, %v301
        %v303 = vrot.slane %v298, %v302
        %v321 = vunpack.c.l.b16 %v250
        %v322 = vunpack.c.h.b16 %v250
        %v323 = vunpack.c.l.b16 %v251
        %v324 = vunpack.c.h.b16 %v251
        %v325 = vunpack.c.l.b16 %v252
        %v326 = vunpack.c.h.b16 %v252
        %v327 = vunpack.c.l.b16 %v253
        %v328 = vunpack.c.h.b16 %v253
        %v329 = vunpack.c.l.b16 %v254
        %v330 = vunpack.c.h.b16 %v254
        %v331 = vunpack.c.l.b16 %v255
        %v332 = vunpack.c.h.b16 %v255
        %v333 = vunpack.c.l.b16 %v256
        %v334 = vunpack.c.h.b16 %v256
        %v335 = vunpack.c.l.b16 %v257
        %v336 = vunpack.c.h.b16 %v257
        %v337 = vunpack.c.l.b16 %v258
        %v338 = vunpack.c.h.b16 %v258
        %v339 = vunpack.c.l.b16 %v259
        %v340 = vunpack.c.h.b16 %v259
        %v341 = vunpack.c.l.b16 %v260
        %v342 = vunpack.c.h.b16 %v260
        %v343 = vunpack.c.l.b16 %v261
        %v344 = vunpack.c.h.b16 %v261
        %v345 = vunpack.c.l.b16 %v262
        %v346 = vunpack.c.h.b16 %v262
        %v347 = vunpack.c.l.b16 %v263
        %v348 = vunpack.c.h.b16 %v263
        %v349 = vunpack.c.l.b16 %v264
        %v350 = vunpack.c.h.b16 %v264
        %v351 = vunpack.c.l.b16 %v265
        %v352 = vunpack.c.h.b16 %v265
        %v353 = vpack.c.b16 %v323, %v321
        %v354 = vpack.c.b16 %v324, %v322
        %v355 = vpack.c.b16 %v327, %v325
        %v356 = vpack.c.b16 %v328, %v326
        %v357 = vpack.c.b16 %v331, %v329
        %v358 = vpack.c.b16 %v332, %v330
        %v359 = vpack.c.b16 %v335, %v333
        %v360 = vpack.c.b16 %v336, %v334
        %v361 = vpack.c.b16 %v339, %v337
        %v362 = vpack.c.b16 %v340, %v338
        %v363 = vpack.c.b16 %v343, %v341
        %v364 = vpack.c.b16 %v344, %v342
        %v365 = vpack.c.b16 %v347, %v345
        %v366 = vpack.c.b16 %v348, %v346
        %v367 = vpack.c.b16 %v351, %v349
        %v368 = vpack.c.b16 %v352, %v350
        %v417 = vunpack.c.l.b16 %v266
        %v418 = vunpack.c.l.b16 %v267
        %v419 = vunpack.c.l.b16 %v268
        %v420 = vunpack.c.l.b16 %v269
        %v421 = vunpack.c.l.b16 %v270
        %v422 = vunpack.c.l.b16 %v271
        %v423 = vunpack.c.l.b16 %v272
        %v424 = vunpack.c.l.b16 %v273
        %v425 = vunpack.c.l.b16 %v274
        %v426 = vunpack.c.l.b16 %v275
        %v427 = vunpack.c.l.b16 %v276
        %v428 = vunpack.c.l.b16 %v277
        %v429 = vunpack.c.l.b16 %v278
        %v430 = vunpack.c.l.b16 %v279
        %v431 = vunpack.c.l.b16 %v280
        %v432 = vunpack.c.l.b16 %v281
        %v433 = vunpack.c.l.b16 %v282
        %v434 = vunpack.c.l.b16 %v283
        %v435 = vunpack.c.l.b16 %v284
        %v436 = vunpack.c.l.b16 %v285
        %v437 = vunpack.c.l.b16 %v286
        %v438 = vunpack.c.l.b16 %v287
        %v439 = vunpack.c.l.b16 %v288
        %v440 = vunpack.c.l.b16 %v289
        %v441 = vunpack.c.l.b16 %v290
        %v442 = vunpack.c.l.b16 %v291
        %v443 = vunpack.c.l.b16 %v292
        %v444 = vunpack.c.l.b16 %v293
        %v445 = vunpack.c.l.b16 %v294
        %v446 = vunpack.c.l.b16 %v295
        %v447 = vunpack.c.l.b16 %v296
        %v448 = vunpack.c.l.b16 %v297
        %v449 = vpack.c.b16 %v418, %v417
        %v450 = vpack.c.b16 %v420, %v419
        %v451 = vpack.c.b16 %v422, %v421
        %v452 = vpack.c.b16 %v424, %v423
        %v453 = vpack.c.b16 %v426, %v425
        %v454 = vpack.c.b16 %v428, %v427
        %v455 = vpack.c.b16 %v430, %v429
        %v456 = vpack.c.b16 %v432, %v431
        %v457 = vpack.c.b16 %v434, %v433
        %v458 = vpack.c.b16 %v436, %v435
        %v459 = vpack.c.b16 %v438, %v437
        %v460 = vpack.c.b16 %v440, %v439
        %v461 = vpack.c.b16 %v442, %v441
        %v462 = vpack.c.b16 %v444, %v443
        %v463 = vpack.c.b16 %v446, %v445
        %v464 = vpack.c.b16 %v448, %v447
        %481 = vmatprep.subr.bf16.mxu0 0
        %482 = vmatpush1.bf16.msra.mxu0 %v456
        %483 = vmatprep.subr.bf16.mxu0 0
        %484 = vmatpush1.bf16.msra.mxu0 %v455
        %485 = vmatprep.subr.bf16.mxu0 0
        %486 = vmatpush1.bf16.msra.mxu0 %v454
        %487 = vmatprep.subr.bf16.mxu0 0
        %488 = vmatpush1.bf16.msra.mxu0 %v453
        %489 = vmatprep.subr.bf16.mxu0 0
        %490 = vmatpush1.bf16.msra.mxu0 %v452
        %491 = vmatprep.subr.bf16.mxu0 0
        %492 = vmatpush1.bf16.msra.mxu0 %v451
        %493 = vmatprep.subr.bf16.mxu0 0
        %494 = vmatpush1.bf16.msra.mxu0 %v450
        %495 = vmatprep.subr.bf16.mxu0 0
        %496 = vmatpush1.bf16.msra.mxu0 %v449
        %497 = vmatprep.subr.bf16.mxu0 0
        %498 = vmatpush2.bf16.msra.mxu0 %v464
        %499 = vmatprep.subr.bf16.mxu0 0
        %500 = vmatpush2.bf16.msra.mxu0 %v463
        %501 = vmatprep.subr.bf16.mxu0 0
        %502 = vmatpush2.bf16.msra.mxu0 %v462
        %503 = vmatprep.subr.bf16.mxu0 0
        %504 = vmatpush2.bf16.msra.mxu0 %v461
        %505 = vmatprep.subr.bf16.mxu0 0
        %506 = vmatpush2.bf16.msra.mxu0 %v460
        %507 = vmatprep.subr.bf16.mxu0 0
        %508 = vmatpush2.bf16.msra.mxu0 %v459
        %509 = vmatprep.subr.bf16.mxu0 0
        %510 = vmatpush2.bf16.msra.mxu0 %v458
        %511 = vmatprep.subr.bf16.mxu0 0
        %512 = vmatpush2.bf16.msra.mxu0 %v457
        %513 = vmatprep.mubr.bf16.mxu0 %v354
        %514 = vmatmul.mubr.bf16.gmra.mxu0 %v353
        %v515 = vpop.f32.mrf.mxu0
        %v516 = vadd.f32 %v303, %v515
        %v517 = vpop.f32.mrf.mxu0
        %v518 = vpop.f32.mrf.mxu0
        %v519 = vadd.f32 %v303, %v518
        %v520 = vpop.f32.mrf.mxu0
        %521 = vmatprep.mubr.bf16.mxu0 %v356
        %522 = vmatmul.mubr.bf16.gmra.mxu0 %v355
        %v523 = vpop.f32.mrf.mxu0
        %v524 = vadd.f32 %v303, %v523
        %v525 = vpop.f32.mrf.mxu0
        %v526 = vpop.f32.mrf.mxu0
        %v527 = vadd.f32 %v303, %v526
        %v528 = vpop.f32.mrf.mxu0
        %529 = vmatprep.mubr.bf16.mxu0 %v358
        %530 = vmatmul.mubr.bf16.gmra.mxu0 %v357
        %v531 = vpop.f32.mrf.mxu0
        %v532 = vadd.f32 %v303, %v531
        %v533 = vpop.f32.mrf.mxu0
        %v534 = vpop.f32.mrf.mxu0
        %v535 = vadd.f32 %v303, %v534
        %v536 = vpop.f32.mrf.mxu0
        %537 = vmatprep.mubr.bf16.mxu0 %v360
        %538 = vmatmul.mubr.bf16.gmra.mxu0 %v359
        %v539 = vpop.f32.mrf.mxu0
        %v540 = vadd.f32 %v303, %v539
        %v541 = vpop.f32.mrf.mxu0
        %v542 = vpop.f32.mrf.mxu0
        %v543 = vadd.f32 %v303, %v542
        %v544 = vpop.f32.mrf.mxu0
        %545 = vmatprep.mubr.bf16.mxu0 %v362
        %546 = vmatmul.mubr.bf16.gmra.mxu0 %v361
        %v547 = vpop.f32.mrf.mxu0
        %v548 = vadd.f32 %v303, %v547
        %v549 = vpop.f32.mrf.mxu0
        %v550 = vpop.f32.mrf.mxu0
        %v551 = vadd.f32 %v303, %v550
        %v552 = vpop.f32.mrf.mxu0
        %553 = vmatprep.mubr.bf16.mxu0 %v364
        %554 = vmatmul.mubr.bf16.gmra.mxu0 %v363
        %v555 = vpop.f32.mrf.mxu0
        %v556 = vadd.f32 %v303, %v555
        %v557 = vpop.f32.mrf.mxu0
        %v558 = vpop.f32.mrf.mxu0
        %v559 = vadd.f32 %v303, %v558
        %v560 = vpop.f32.mrf.mxu0
        %561 = vmatprep.mubr.bf16.mxu0 %v366
        %562 = vmatmul.mubr.bf16.gmra.mxu0 %v365
        %v563 = vpop.f32.mrf.mxu0
        %v564 = vadd.f32 %v303, %v563
        %v565 = vpop.f32.mrf.mxu0
        %v566 = vpop.f32.mrf.mxu0
        %v567 = vadd.f32 %v303, %v566
        %v568 = vpop.f32.mrf.mxu0
        %569 = vmatprep.mubr.bf16.mxu0 %v368
        %570 = vmatmul.mubr.bf16.gmra.mxu0 %v367
        %v571 = vpop.f32.mrf.mxu0
        %v572 = vadd.f32 %v303, %v571
        %v573 = vpop.f32.mrf.mxu0
        %v574 = vpop.f32.mrf.mxu0
        %v575 = vadd.f32 %v303, %v574
        %v576 = vpop.f32.mrf.mxu0
        %577 = vdwg.mxu0
        %v578 = vtanh.pop %v516
        %v579 = vtanh.pop %v519
        %v580 = vtanh.pop %v524
        %v581 = vtanh.pop %v527
        %v582 = vtanh.pop %v532
        %v583 = vtanh.pop %v535
        %v584 = vtanh.pop %v540
        %v585 = vtanh.pop %v543
        %v586 = vtanh.pop %v548
        %v587 = vtanh.pop %v551
        %v588 = vtanh.pop %v556
        %v589 = vtanh.pop %v559
        %v590 = vtanh.pop %v564
        %v591 = vtanh.pop %v567
        %v592 = vtanh.pop %v572
        %v593 = vtanh.pop %v575
        %v594 = vld [vmem:[%s2 + $0x80] sm:$0xf]
        %v595 = vld [vmem:[%s2 + $0x84] sm:$0xf]
        %v596 = vld [vmem:[%s2 + $0x88] sm:$0xf]
        %v597 = vld [vmem:[%s2 + $0x8c] sm:$0xf]
        %v598 = vld [vmem:[%s2 + $0x90] sm:$0xf]
        %v599 = vld [vmem:[%s2 + $0x94] sm:$0xf]
        %v600 = vld [vmem:[%s2 + $0x98] sm:$0xf]
        %v601 = vld [vmem:[%s2 + $0x9c] sm:$0xf]
        %v602 = vpack.c.bf16 %v579, %v578
        %v603 = vpack.c.bf16 %v581, %v580
        %v604 = vpack.c.bf16 %v583, %v582
        %v605 = vpack.c.bf16 %v585, %v584
        %v606 = vpack.c.bf16 %v587, %v586
        %v607 = vpack.c.bf16 %v589, %v588
        %v608 = vpack.c.bf16 %v591, %v590
        %v609 = vpack.c.bf16 %v593, %v592
        %v618 = vunpack.c.l.b16 %v594
        %v619 = vunpack.c.l.b16 %v595
        %v620 = vunpack.c.l.b16 %v596
        %v621 = vunpack.c.l.b16 %v597
        %v622 = vunpack.c.l.b16 %v598
        %v623 = vunpack.c.l.b16 %v599
        %v624 = vunpack.c.l.b16 %v600
        %v625 = vunpack.c.l.b16 %v601
        %v626 = vpack.c.b16 %v619, %v618
        %v627 = vpack.c.b16 %v621, %v620
        %v628 = vpack.c.b16 %v623, %v622
        %v629 = vpack.c.b16 %v625, %v624
        %634 = vrot.lane.b32.xlu0 %v303, 64
        %v635 = vpop.permute.xlu0 %634
        %vm637 = vcmask 523264
        %v639 = vsel %vm637, %v602, 0
        %v642 = vsel %vm637, %v603, 0
        %v645 = vsel %vm637, %v604, 0
        %v648 = vsel %vm637, %v605, 0
        %v651 = vsel %vm637, %v606, 0
        %v654 = vsel %vm637, %v607, 0
        %v657 = vsel %vm637, %v608, 0
        %v660 = vsel %vm637, %v609, 0
        %662 = vmatprep.subr.bf16.mxu0 0
        %663 = vmatpush1.bf16.msra.mxu0 0
        %664 = vmatprep.subr.bf16.mxu0 0
        %665 = vmatpush1.bf16.msra.mxu0 0
        %666 = vmatprep.subr.bf16.mxu0 0
        %667 = vmatpush1.bf16.msra.mxu0 0
        %668 = vmatprep.subr.bf16.mxu0 0
        %669 = vmatpush1.bf16.msra.mxu0 0
        %670 = vmatprep.subr.bf16.mxu0 0
        %671 = vmatpush1.bf16.msra.mxu0 %v629
        %672 = vmatprep.subr.bf16.mxu0 0
        %673 = vmatpush1.bf16.msra.mxu0 %v628
        %674 = vmatprep.subr.bf16.mxu0 0
        %675 = vmatpush1.bf16.msra.mxu0 %v627
        %676 = vmatprep.subr.bf16.mxu0 0
        %677 = vmatpush1.bf16.msra.mxu0 %v626
        %678 = vmatprep.subr.bf16.mxu0 0
        %679 = vmatpush2.bf16.msra.mxu0 0
        %680 = vmatprep.subr.bf16.mxu0 0
        %681 = vmatpush2.bf16.msra.mxu0 0
        %682 = vmatprep.subr.bf16.mxu0 0
        %683 = vmatpush2.bf16.msra.mxu0 0
        %684 = vmatprep.subr.bf16.mxu0 0
        %685 = vmatpush2.bf16.msra.mxu0 0
        %686 = vmatprep.subr.bf16.mxu0 0
        %687 = vmatpush2.bf16.msra.mxu0 0
        %688 = vmatprep.subr.bf16.mxu0 0
        %689 = vmatpush2.bf16.msra.mxu0 0
        %690 = vmatprep.subr.bf16.mxu0 0
        %691 = vmatpush2.bf16.msra.mxu0 0
        %692 = vmatprep.subr.bf16.mxu0 0
        %693 = vmatpush2.bf16.msra.mxu0 0
        %694 = vmatprep.mubr.bf16.mxu0 0
        %695 = vmatmul.mubr.bf16.gmra.mxu0 %v639
        %v696 = vpop.f32.mrf.mxu0
        %v697 = vadd.f32 %v635, %v696
        %v698 = vpop.f32.mrf.mxu0
        %v699 = vpop.f32.mrf.mxu0
        %v700 = vadd.f32 %v635, %v699
        %v701 = vpop.f32.mrf.mxu0
        %702 = vmatprep.mubr.bf16.mxu0 0
        %703 = vmatmul.mubr.bf16.gmra.mxu0 %v642
        %v704 = vpop.f32.mrf.mxu0
        %v705 = vadd.f32 %v635, %v704
        %v706 = vpop.f32.mrf.mxu0
        %v707 = vpop.f32.mrf.mxu0
        %v708 = vadd.f32 %v635, %v707
        %v709 = vpop.f32.mrf.mxu0
        %710 = vmatprep.mubr.bf16.mxu0 0
        %711 = vmatmul.mubr.bf16.gmra.mxu0 %v645
        %v712 = vpop.f32.mrf.mxu0
        %v713 = vadd.f32 %v635, %v712
        %v714 = vpop.f32.mrf.mxu0
        %v715 = vpop.f32.mrf.mxu0
        %v716 = vadd.f32 %v635, %v715
        %v717 = vpop.f32.mrf.mxu0
        %718 = vmatprep.mubr.bf16.mxu0 0
        %719 = vmatmul.mubr.bf16.gmra.mxu0 %v648
        %v720 = vpop.f32.mrf.mxu0
        %v721 = vadd.f32 %v635, %v720
        %v722 = vpop.f32.mrf.mxu0
        %v723 = vpop.f32.mrf.mxu0
        %v724 = vadd.f32 %v635, %v723
        %v725 = vpop.f32.mrf.mxu0
        %726 = vmatprep.mubr.bf16.mxu0 0
        %727 = vmatmul.mubr.bf16.gmra.mxu0 %v651
        %v728 = vpop.f32.mrf.mxu0
        %v729 = vadd.f32 %v635, %v728
        %v730 = vpop.f32.mrf.mxu0
        %v731 = vpop.f32.mrf.mxu0
        %v732 = vadd.f32 %v635, %v731
        %v733 = vpop.f32.mrf.mxu0
        %734 = vmatprep.mubr.bf16.mxu0 0
        %735 = vmatmul.mubr.bf16.gmra.mxu0 %v654
        %v736 = vpop.f32.mrf.mxu0
        %v737 = vadd.f32 %v635, %v736
        %v738 = vpop.f32.mrf.mxu0
        %v739 = vpop.f32.mrf.mxu0
        %v740 = vadd.f32 %v635, %v739
        %v741 = vpop.f32.mrf.mxu0
        %742 = vmatprep.mubr.bf16.mxu0 0
        %743 = vmatmul.mubr.bf16.gmra.mxu0 %v657
        %v744 = vpop.f32.mrf.mxu0
        %v745 = vadd.f32 %v635, %v744
        %v746 = vpop.f32.mrf.mxu0
        %v747 = vpop.f32.mrf.mxu0
        %v748 = vadd.f32 %v635, %v747
        %v749 = vpop.f32.mrf.mxu0
        %750 = vmatprep.mubr.bf16.mxu0 0
        %751 = vmatmul.mubr.bf16.gmra.mxu0 %v660
        %v752 = vpop.f32.mrf.mxu0
        %v753 = vadd.f32 %v635, %v752
        %v754 = vpop.f32.mrf.mxu0
        %v755 = vpop.f32.mrf.mxu0
        %v756 = vadd.f32 %v635, %v755
        %v757 = vpop.f32.mrf.mxu0
        %758 = vdwg.mxu0
        %v759 = vtanh.pop %v697
        %v760 = vtanh.pop %v700
        %v761 = vtanh.pop %v705
        %v762 = vtanh.pop %v708
        %v763 = vtanh.pop %v713
        %v764 = vtanh.pop %v716
        %v765 = vtanh.pop %v721
        %v766 = vtanh.pop %v724
        %v767 = vtanh.pop %v729
        %v768 = vtanh.pop %v732
        %v769 = vtanh.pop %v737
        %v770 = vtanh.pop %v740
        %v771 = vtanh.pop %v745
        %v772 = vtanh.pop %v748
        %v773 = vtanh.pop %v753
        %v774 = vtanh.pop %v756
        %v775 = vld [vmem:[%s2 + $0xa0] sm:$0xf]
        %v776 = vld [vmem:[%s2 + $0xa4] sm:$0xf]
        %v777 = vld [vmem:[%s2 + $0xa8] sm:$0xf]
        %v778 = vld [vmem:[%s2 + $0xac] sm:$0xf]
        %v779 = vld [vmem:[%s2 + $0xb0] sm:$0xf]
        %v780 = vld [vmem:[%s2 + $0xb4] sm:$0xf]
        %v781 = vld [vmem:[%s2 + $0xb8] sm:$0xf]
        %v782 = vld [vmem:[%s2 + $0xbc] sm:$0xf]
        %v783 = vld [vmem:[%s4 + $0x1] sm:$0x1]
        %v784 = vpack.c.bf16 %v760, %v759
        %v785 = vpack.c.bf16 %v762, %v761
        %v786 = vpack.c.bf16 %v764, %v763
        %v787 = vpack.c.bf16 %v766, %v765
        %v788 = vpack.c.bf16 %v768, %v767
        %v789 = vpack.c.bf16 %v770, %v769
        %v790 = vpack.c.bf16 %v772, %v771
        %v791 = vpack.c.bf16 %v774, %v773
        %v793 = vlaneseq
        %v794 = vshrl.u32 %v793, 7
        %v795 = vsub.s32 0, %v794
        %v796 = vrot.slane %v783, %v795
        %v806 = vunpack.c.l.b16 %v775
        %v807 = vunpack.c.l.b16 %v776
        %v808 = vunpack.c.l.b16 %v777
        %v809 = vunpack.c.l.b16 %v778
        %v810 = vunpack.c.l.b16 %v779
        %v811 = vunpack.c.l.b16 %v780
        %v812 = vunpack.c.l.b16 %v781
        %v813 = vunpack.c.l.b16 %v782
        %v814 = vpack.c.b16 %v807, %v806
        %v815 = vpack.c.b16 %v809, %v808
        %v816 = vpack.c.b16 %v811, %v810
        %v817 = vpack.c.b16 %v813, %v812
        %v823 = vsel %vm637, %v784, 0
        %v826 = vsel %vm637, %v785, 0
        %v829 = vsel %vm637, %v786, 0
        %v832 = vsel %vm637, %v787, 0
        %v835 = vsel %vm637, %v788, 0
        %v838 = vsel %vm637, %v789, 0
        %v841 = vsel %vm637, %v790, 0
        %v844 = vsel %vm637, %v791, 0
        %846 = vmatprep.subr.bf16.mxu0 0
        %847 = vmatpush1.bf16.msra.mxu0 0
        %848 = vmatprep.subr.bf16.mxu0 0
        %849 = vmatpush1.bf16.msra.mxu0 0
        %850 = vmatprep.subr.bf16.mxu0 0
        %851 = vmatpush1.bf16.msra.mxu0 0
        %852 = vmatprep.subr.bf16.mxu0 0
        %853 = vmatpush1.bf16.msra.mxu0 0
        %854 = vmatprep.subr.bf16.mxu0 0
        %855 = vmatpush1.bf16.msra.mxu0 %v817
        %856 = vmatprep.subr.bf16.mxu0 0
        %857 = vmatpush1.bf16.msra.mxu0 %v816
        %858 = vmatprep.subr.bf16.mxu0 0
        %859 = vmatpush1.bf16.msra.mxu0 %v815
        %860 = vmatprep.subr.bf16.mxu0 0
        %861 = vmatpush1.bf16.msra.mxu0 %v814
        %862 = vmatprep.subr.bf16.mxu0 0
        %863 = vmatpush2.bf16.msra.mxu0 0
        %864 = vmatprep.subr.bf16.mxu0 0
        %865 = vmatpush2.bf16.msra.mxu0 0
        %866 = vmatprep.subr.bf16.mxu0 0
        %867 = vmatpush2.bf16.msra.mxu0 0
        %868 = vmatprep.subr.bf16.mxu0 0
        %869 = vmatpush2.bf16.msra.mxu0 0
        %870 = vmatprep.subr.bf16.mxu0 0
        %871 = vmatpush2.bf16.msra.mxu0 0
        %872 = vmatprep.subr.bf16.mxu0 0
        %873 = vmatpush2.bf16.msra.mxu0 0
        %874 = vmatprep.subr.bf16.mxu0 0
        %875 = vmatpush2.bf16.msra.mxu0 0
        %876 = vmatprep.subr.bf16.mxu0 0
        %877 = vmatpush2.bf16.msra.mxu0 0
        %878 = vmatprep.mubr.bf16.mxu0 0
        %879 = vmatmul.mubr.bf16.gmra.mxu0 %v823
        %v880 = vpop.f32.mrf.mxu0
        %v881 = vadd.f32 %v796, %v880
        %v882 = vpop.f32.mrf.mxu0
        %v883 = vpop.f32.mrf.mxu0
        %v884 = vadd.f32 %v796, %v883
        %v885 = vpop.f32.mrf.mxu0
        %886 = vmatprep.mubr.bf16.mxu0 0
        %887 = vmatmul.mubr.bf16.gmra.mxu0 %v826
        %v888 = vpop.f32.mrf.mxu0
        %v889 = vadd.f32 %v796, %v888
        %v890 = vpop.f32.mrf.mxu0
        %v891 = vpop.f32.mrf.mxu0
        %v892 = vadd.f32 %v796, %v891
        %v893 = vpop.f32.mrf.mxu0
        %894 = vmatprep.mubr.bf16.mxu0 0
        %895 = vmatmul.mubr.bf16.gmra.mxu0 %v829
        %v896 = vpop.f32.mrf.mxu0
        %v897 = vadd.f32 %v796, %v896
        %v898 = vpop.f32.mrf.mxu0
        %v899 = vpop.f32.mrf.mxu0
        %v900 = vadd.f32 %v796, %v899
        %v901 = vpop.f32.mrf.mxu0
        %902 = vmatprep.mubr.bf16.mxu0 0
        %903 = vmatmul.mubr.bf16.gmra.mxu0 %v832
        %v904 = vpop.f32.mrf.mxu0
        %v905 = vadd.f32 %v796, %v904
        %v906 = vpop.f32.mrf.mxu0
        %v907 = vpop.f32.mrf.mxu0
        %v908 = vadd.f32 %v796, %v907
        %v909 = vpop.f32.mrf.mxu0
        %910 = vmatprep.mubr.bf16.mxu0 0
        %911 = vmatmul.mubr.bf16.gmra.mxu0 %v835
        %v912 = vpop.f32.mrf.mxu0
        %v913 = vadd.f32 %v796, %v912
        %v914 = vpop.f32.mrf.mxu0
        %v915 = vpop.f32.mrf.mxu0
        %v916 = vadd.f32 %v796, %v915
        %v917 = vpop.f32.mrf.mxu0
        %918 = vmatprep.mubr.bf16.mxu0 0
        %919 = vmatmul.mubr.bf16.gmra.mxu0 %v838
        %v920 = vpop.f32.mrf.mxu0
        %v921 = vadd.f32 %v796, %v920
        %v922 = vpop.f32.mrf.mxu0
        %v923 = vpop.f32.mrf.mxu0
        %v924 = vadd.f32 %v796, %v923
        %v925 = vpop.f32.mrf.mxu0
        %926 = vmatprep.mubr.bf16.mxu0 0
        %927 = vmatmul.mubr.bf16.gmra.mxu0 %v841
        %v928 = vpop.f32.mrf.mxu0
        %v929 = vadd.f32 %v796, %v928
        %v930 = vpop.f32.mrf.mxu0
        %v931 = vpop.f32.mrf.mxu0
        %v932 = vadd.f32 %v796, %v931
        %v933 = vpop.f32.mrf.mxu0
        %934 = vmatprep.mubr.bf16.mxu0 0
        %935 = vmatmul.mubr.bf16.gmra.mxu0 %v844
        %v936 = vpop.f32.mrf.mxu0
        %v937 = vadd.f32 %v796, %v936
        %v938 = vpop.f32.mrf.mxu0
        %v939 = vpop.f32.mrf.mxu0
        %v940 = vadd.f32 %v796, %v939
        %v941 = vpop.f32.mrf.mxu0
        %942 = vdwg.mxu0
        %v943 = vmul.f32 %v881, 1.442695
        %v944 = vpow.pop %v943
        %v945 = vmul.f32 %v884, 1.442695
        %v946 = vpow.pop %v945
        %v947 = vmul.f32 %v889, 1.442695
        %v948 = vpow.pop %v947
        %v949 = vmul.f32 %v892, 1.442695
        %v950 = vpow.pop %v949
        %v951 = vmul.f32 %v897, 1.442695
        %v952 = vpow.pop %v951
        %v953 = vmul.f32 %v900, 1.442695
        %v954 = vpow.pop %v953
        %v955 = vmul.f32 %v905, 1.442695
        %v956 = vpow.pop %v955
        %v957 = vmul.f32 %v908, 1.442695
        %v958 = vpow.pop %v957
        %v959 = vmul.f32 %v913, 1.442695
        %v960 = vpow.pop %v959
        %v961 = vmul.f32 %v916, 1.442695
        %v962 = vpow.pop %v961
        %v963 = vmul.f32 %v921, 1.442695
        %v964 = vpow.pop %v963
        %v965 = vmul.f32 %v924, 1.442695
        %v966 = vpow.pop %v965
        %v967 = vmul.f32 %v929, 1.442695
        %v968 = vpow.pop %v967
        %v969 = vmul.f32 %v932, 1.442695
        %v970 = vpow.pop %v969
        %v971 = vmul.f32 %v937, 1.442695
        %v972 = vpow.pop %v971
        %v973 = vmul.f32 %v940, 1.442695
        %v974 = vpow.pop %v973
        %v975 = vadd.f32 %v944, 0.0001
        %v976 = vadd.f32 %v946, 0.0001
        %v977 = vadd.f32 %v948, 0.0001
        %v978 = vadd.f32 %v950, 0.0001
        %v979 = vadd.f32 %v952, 0.0001
        %v980 = vadd.f32 %v954, 0.0001
        %v981 = vadd.f32 %v956, 0.0001
        %v982 = vadd.f32 %v958, 0.0001
        %v983 = vadd.f32 %v960, 0.0001
        %v984 = vadd.f32 %v962, 0.0001
        %v985 = vadd.f32 %v964, 0.0001
        %v986 = vadd.f32 %v966, 0.0001
        %v987 = vadd.f32 %v968, 0.0001
        %v988 = vadd.f32 %v970, 0.0001
        %v989 = vadd.f32 %v972, 0.0001
        %v990 = vadd.f32 %v974, 0.0001
        %v991 = vld [vmem:[%s247] sm:$0xff]
        %v992 = vld [vmem:[%s247 + $0x8] sm:$0xff]
        %v993 = vld [vmem:[%s247 + $0x10] sm:$0xff]
        %v994 = vld [vmem:[%s247 + $0x18] sm:$0xff]
        %v995 = vld [vmem:[%s247 + $0x20] sm:$0xff]
        %v996 = vld [vmem:[%s247 + $0x28] sm:$0xff]
        %v997 = vld [vmem:[%s247 + $0x30] sm:$0xff]
        %v998 = vld [vmem:[%s247 + $0x38] sm:$0xff]
        %v999 = vld [vmem:[%s247 + $0x40] sm:$0xff]
        %v1000 = vld [vmem:[%s247 + $0x48] sm:$0xff]
        %v1001 = vld [vmem:[%s247 + $0x50] sm:$0xff]
        %v1002 = vld [vmem:[%s247 + $0x58] sm:$0xff]
        %v1003 = vld [vmem:[%s247 + $0x60] sm:$0xff]
        %v1004 = vld [vmem:[%s247 + $0x68] sm:$0xff]
        %v1005 = vld [vmem:[%s247 + $0x70] sm:$0xff]
        %v1006 = vld [vmem:[%s247 + $0x78] sm:$0xff]
        %1023 = vrot.lane.b32.xlu0 %v991, 32
        %v1024 = vpop.permute.xlu0 %1023
        %1025 = vrot.lane.b32.xlu0 %v992, 32
        %v1026 = vpop.permute.xlu0 %1025
        %1027 = vrot.lane.b32.xlu0 %v993, 32
        %v1028 = vpop.permute.xlu0 %1027
        %1029 = vrot.lane.b32.xlu0 %v994, 32
        %v1030 = vpop.permute.xlu0 %1029
        %1031 = vrot.lane.b32.xlu0 %v995, 32
        %v1032 = vpop.permute.xlu0 %1031
        %1033 = vrot.lane.b32.xlu0 %v996, 32
        %v1034 = vpop.permute.xlu0 %1033
        %1035 = vrot.lane.b32.xlu0 %v997, 32
        %v1036 = vpop.permute.xlu0 %1035
        %1037 = vrot.lane.b32.xlu0 %v998, 32
        %v1038 = vpop.permute.xlu0 %1037
        %1039 = vrot.lane.b32.xlu0 %v999, 32
        %v1040 = vpop.permute.xlu0 %1039
        %1041 = vrot.lane.b32.xlu0 %v1000, 32
        %v1042 = vpop.permute.xlu0 %1041
        %1043 = vrot.lane.b32.xlu0 %v1001, 32
        %v1044 = vpop.permute.xlu0 %1043
        %1045 = vrot.lane.b32.xlu0 %v1002, 32
        %v1046 = vpop.permute.xlu0 %1045
        %1047 = vrot.lane.b32.xlu0 %v1003, 32
        %v1048 = vpop.permute.xlu0 %1047
        %1049 = vrot.lane.b32.xlu0 %v1004, 32
        %v1050 = vpop.permute.xlu0 %1049
        %1051 = vrot.lane.b32.xlu0 %v1005, 32
        %v1052 = vpop.permute.xlu0 %1051
        %1053 = vrot.lane.b32.xlu0 %v1006, 32
        %v1054 = vpop.permute.xlu0 %1053
        %v1071 = vmul.f32 %v975, %v1024
        %v1072 = vmul.f32 %v976, %v1026
        %v1073 = vmul.f32 %v977, %v1028
        %v1074 = vmul.f32 %v978, %v1030
        %v1075 = vmul.f32 %v979, %v1032
        %v1076 = vmul.f32 %v980, %v1034
        %v1077 = vmul.f32 %v981, %v1036
        %v1078 = vmul.f32 %v982, %v1038
        %v1079 = vmul.f32 %v983, %v1040
        %v1080 = vmul.f32 %v984, %v1042
        %v1081 = vmul.f32 %v985, %v1044
        %v1082 = vmul.f32 %v986, %v1046
        %v1083 = vmul.f32 %v987, %v1048
        %v1084 = vmul.f32 %v988, %v1050
        %v1085 = vmul.f32 %v989, %v1052
        %v1086 = vmul.f32 %v990, %v1054
        %1103 = vrot.lane.b32.xlu0 %v1071, 96
        %v1104 = vpop.permute.xlu0 %1103
        %1105 = vrot.lane.b32.xlu0 %v1072, 96
        %v1106 = vpop.permute.xlu0 %1105
        %1107 = vrot.lane.b32.xlu0 %v1073, 96
        %v1108 = vpop.permute.xlu0 %1107
        %1109 = vrot.lane.b32.xlu0 %v1074, 96
        %v1110 = vpop.permute.xlu0 %1109
        %1111 = vrot.lane.b32.xlu0 %v1075, 96
        %v1112 = vpop.permute.xlu0 %1111
        %1113 = vrot.lane.b32.xlu0 %v1076, 96
        %v1114 = vpop.permute.xlu0 %1113
        %1115 = vrot.lane.b32.xlu0 %v1077, 96
        %v1116 = vpop.permute.xlu0 %1115
        %1117 = vrot.lane.b32.xlu0 %v1078, 96
        %v1118 = vpop.permute.xlu0 %1117
        %1119 = vrot.lane.b32.xlu0 %v1079, 96
        %v1120 = vpop.permute.xlu0 %1119
        %1121 = vrot.lane.b32.xlu0 %v1080, 96
        %v1122 = vpop.permute.xlu0 %1121
        %1123 = vrot.lane.b32.xlu0 %v1081, 96
        %v1124 = vpop.permute.xlu0 %1123
        %1125 = vrot.lane.b32.xlu0 %v1082, 96
        %v1126 = vpop.permute.xlu0 %1125
        %1127 = vrot.lane.b32.xlu0 %v1083, 96
        %v1128 = vpop.permute.xlu0 %1127
        %1129 = vrot.lane.b32.xlu0 %v1084, 96
        %v1130 = vpop.permute.xlu0 %1129
        %1131 = vrot.lane.b32.xlu0 %v1085, 96
        %v1132 = vpop.permute.xlu0 %1131
        %1133 = vrot.lane.b32.xlu0 %v1086, 96
        %v1134 = vpop.permute.xlu0 %1133
        %v1151 = vadd.f32 %v881, %v1104
        %v1152 = vadd.f32 %v884, %v1106
        %v1153 = vadd.f32 %v889, %v1108
        %v1154 = vadd.f32 %v892, %v1110
        %v1155 = vadd.f32 %v897, %v1112
        %v1156 = vadd.f32 %v900, %v1114
        %v1157 = vadd.f32 %v905, %v1116
        %v1158 = vadd.f32 %v908, %v1118
        %v1159 = vadd.f32 %v913, %v1120
        %v1160 = vadd.f32 %v916, %v1122
        %v1161 = vadd.f32 %v921, %v1124
        %v1162 = vadd.f32 %v924, %v1126
        %v1163 = vadd.f32 %v929, %v1128
        %v1164 = vadd.f32 %v932, %v1130
        %v1165 = vadd.f32 %v937, %v1132
        %v1166 = vadd.f32 %v940, %v1134
        %v1167 = vld [vmem:[%s2 + $0xc0] sm:$0xf]
        %v1168 = vld [vmem:[%s2 + $0xc4] sm:$0xf]
        %v1169 = vld [vmem:[%s2 + $0xc8] sm:$0xf]
        %v1170 = vld [vmem:[%s2 + $0xcc] sm:$0xf]
        %v1171 = vpack.c.bf16 %v1152, %v1151
        %v1172 = vpack.c.bf16 %v1154, %v1153
        %v1173 = vpack.c.bf16 %v1156, %v1155
        %v1174 = vpack.c.bf16 %v1158, %v1157
        %v1175 = vpack.c.bf16 %v1160, %v1159
        %v1176 = vpack.c.bf16 %v1162, %v1161
        %v1177 = vpack.c.bf16 %v1164, %v1163
        %v1178 = vpack.c.bf16 %v1166, %v1165
        %v1183 = vunpack.c.l.b16 %v1167
        %v1184 = vunpack.c.l.b16 %v1168
        %v1185 = vunpack.c.l.b16 %v1169
        %v1186 = vunpack.c.l.b16 %v1170
        %v1187 = vpack.c.b16 %v1184, %v1183
        %v1188 = vpack.c.b16 %v1186, %v1185
        %1191 = vrot.lane.b32.xlu0 %v796, 64
        %v1192 = vpop.permute.xlu0 %1191
        %vm1194 = vcmask 261120
        %v1196 = vsel %vm1194, %v1171, 0
        %v1199 = vsel %vm1194, %v1172, 0
        %v1202 = vsel %vm1194, %v1173, 0
        %v1205 = vsel %vm1194, %v1174, 0
        %v1208 = vsel %vm1194, %v1175, 0
        %v1211 = vsel %vm1194, %v1176, 0
        %v1214 = vsel %vm1194, %v1177, 0
        %v1217 = vsel %vm1194, %v1178, 0
        %1219 = vmatprep.subr.bf16.mxu0 0
        %1220 = vmatpush1.bf16.msra.mxu0 0
        %1221 = vmatprep.subr.bf16.mxu0 0
        %1222 = vmatpush1.bf16.msra.mxu0 0
        %1223 = vmatprep.subr.bf16.mxu0 0
        %1224 = vmatpush1.bf16.msra.mxu0 0
        %1225 = vmatprep.subr.bf16.mxu0 0
        %1226 = vmatpush1.bf16.msra.mxu0 0
        %1227 = vmatprep.subr.bf16.mxu0 0
        %1228 = vmatpush1.bf16.msra.mxu0 0
        %1229 = vmatprep.subr.bf16.mxu0 0
        %1230 = vmatpush1.bf16.msra.mxu0 0
        %1231 = vmatprep.subr.bf16.mxu0 0
        %1232 = vmatpush1.bf16.msra.mxu0 %v1188
        %1233 = vmatprep.subr.bf16.mxu0 0
        %1234 = vmatpush1.bf16.msra.mxu0 %v1187
        %1235 = vmatprep.subr.bf16.mxu0 0
        %1236 = vmatpush2.bf16.msra.mxu0 0
        %1237 = vmatprep.subr.bf16.mxu0 0
        %1238 = vmatpush2.bf16.msra.mxu0 0
        %1239 = vmatprep.subr.bf16.mxu0 0
        %1240 = vmatpush2.bf16.msra.mxu0 0
        %1241 = vmatprep.subr.bf16.mxu0 0
        %1242 = vmatpush2.bf16.msra.mxu0 0
        %1243 = vmatprep.subr.bf16.mxu0 0
        %1244 = vmatpush2.bf16.msra.mxu0 0
        %1245 = vmatprep.subr.bf16.mxu0 0
        %1246 = vmatpush2.bf16.msra.mxu0 0
        %1247 = vmatprep.subr.bf16.mxu0 0
        %1248 = vmatpush2.bf16.msra.mxu0 0
        %1249 = vmatprep.subr.bf16.mxu0 0
        %1250 = vmatpush2.bf16.msra.mxu0 0
        %1251 = vmatprep.mubr.bf16.mxu0 0
        %1252 = vmatmul.mubr.bf16.gmra.mxu0 %v1196
        %v1253 = vpop.f32.mrf.mxu0
        %v1254 = vadd.f32 %v1192, %v1253
        %v1255 = vpop.f32.mrf.mxu0
        %v1256 = vpop.f32.mrf.mxu0
        %v1257 = vadd.f32 %v1192, %v1256
        %v1258 = vpop.f32.mrf.mxu0
        %1259 = vmatprep.mubr.bf16.mxu0 0
        %1260 = vmatmul.mubr.bf16.gmra.mxu0 %v1199
        %v1261 = vpop.f32.mrf.mxu0
        %v1262 = vadd.f32 %v1192, %v1261
        %v1263 = vpop.f32.mrf.mxu0
        %v1264 = vpop.f32.mrf.mxu0
        %v1265 = vadd.f32 %v1192, %v1264
        %v1266 = vpop.f32.mrf.mxu0
        %1267 = vmatprep.mubr.bf16.mxu0 0
        %1268 = vmatmul.mubr.bf16.gmra.mxu0 %v1202
        %v1269 = vpop.f32.mrf.mxu0
        %v1270 = vadd.f32 %v1192, %v1269
        %v1271 = vpop.f32.mrf.mxu0
        %v1272 = vpop.f32.mrf.mxu0
        %v1273 = vadd.f32 %v1192, %v1272
        %v1274 = vpop.f32.mrf.mxu0
        %1275 = vmatprep.mubr.bf16.mxu0 0
        %1276 = vmatmul.mubr.bf16.gmra.mxu0 %v1205
        %v1277 = vpop.f32.mrf.mxu0
        %v1278 = vadd.f32 %v1192, %v1277
        %v1279 = vpop.f32.mrf.mxu0
        %v1280 = vpop.f32.mrf.mxu0
        %v1281 = vadd.f32 %v1192, %v1280
        %v1282 = vpop.f32.mrf.mxu0
        %1283 = vmatprep.mubr.bf16.mxu0 0
        %1284 = vmatmul.mubr.bf16.gmra.mxu0 %v1208
        %v1285 = vpop.f32.mrf.mxu0
        %v1286 = vadd.f32 %v1192, %v1285
        %v1287 = vpop.f32.mrf.mxu0
        %v1288 = vpop.f32.mrf.mxu0
        %v1289 = vadd.f32 %v1192, %v1288
        %v1290 = vpop.f32.mrf.mxu0
        %1291 = vmatprep.mubr.bf16.mxu0 0
        %1292 = vmatmul.mubr.bf16.gmra.mxu0 %v1211
        %v1293 = vpop.f32.mrf.mxu0
        %v1294 = vadd.f32 %v1192, %v1293
        %v1295 = vpop.f32.mrf.mxu0
        %v1296 = vpop.f32.mrf.mxu0
        %v1297 = vadd.f32 %v1192, %v1296
        %v1298 = vpop.f32.mrf.mxu0
        %1299 = vmatprep.mubr.bf16.mxu0 0
        %1300 = vmatmul.mubr.bf16.gmra.mxu0 %v1214
        %v1301 = vpop.f32.mrf.mxu0
        %v1302 = vadd.f32 %v1192, %v1301
        %v1303 = vpop.f32.mrf.mxu0
        %v1304 = vpop.f32.mrf.mxu0
        %v1305 = vadd.f32 %v1192, %v1304
        %v1306 = vpop.f32.mrf.mxu0
        %1307 = vmatprep.mubr.bf16.mxu0 0
        %1308 = vmatmul.mubr.bf16.gmra.mxu0 %v1217
        %v1309 = vpop.f32.mrf.mxu0
        %v1310 = vadd.f32 %v1192, %v1309
        %v1311 = vpop.f32.mrf.mxu0
        %v1312 = vpop.f32.mrf.mxu0
        %v1313 = vadd.f32 %v1192, %v1312
        %v1314 = vpop.f32.mrf.mxu0
        %1315 = vdwg.mxu0
        %v1316 = vtanh.pop %v1254
        %v1317 = vtanh.pop %v1257
        %v1318 = vtanh.pop %v1262
        %v1319 = vtanh.pop %v1265
        %v1320 = vtanh.pop %v1270
        %v1321 = vtanh.pop %v1273
        %v1322 = vtanh.pop %v1278
        %v1323 = vtanh.pop %v1281
        %v1324 = vtanh.pop %v1286
        %v1325 = vtanh.pop %v1289
        %v1326 = vtanh.pop %v1294
        %v1327 = vtanh.pop %v1297
        %v1328 = vtanh.pop %v1302
        %v1329 = vtanh.pop %v1305
        %v1330 = vtanh.pop %v1310
        %v1331 = vtanh.pop %v1313
        %v1332 = vld [vmem:[%s2 + $0xd0] sm:$0xf]
        %v1333 = vld [vmem:[%s2 + $0xd4] sm:$0xf]
        %v1334 = vld [vmem:[%s2 + $0xd8] sm:$0xf]
        %v1335 = vld [vmem:[%s2 + $0xdc] sm:$0xf]
        %v1336 = vld [vmem:[%s2 + $0xe0] sm:$0xf]
        %v1337 = vld [vmem:[%s2 + $0xe4] sm:$0xf]
        %v1338 = vld [vmem:[%s2 + $0xe8] sm:$0xf]
        %v1339 = vld [vmem:[%s2 + $0xec] sm:$0xf]
        %v1340 = vld [vmem:[%s4 + $0x2] sm:$0x1]
        %v1341 = vpack.c.bf16 %v1317, %v1316
        %v1342 = vpack.c.bf16 %v1319, %v1318
        %v1343 = vpack.c.bf16 %v1321, %v1320
        %v1344 = vpack.c.bf16 %v1323, %v1322
        %v1345 = vpack.c.bf16 %v1325, %v1324
        %v1346 = vpack.c.bf16 %v1327, %v1326
        %v1347 = vpack.c.bf16 %v1329, %v1328
        %v1348 = vpack.c.bf16 %v1331, %v1330
        %v1350 = vlaneseq
        %v1351 = vshrl.u32 %v1350, 7
        %v1352 = vsub.s32 0, %v1351
        %v1353 = vrot.slane %v1340, %v1352
        %v1363 = vunpack.c.l.b16 %v1332
        %v1364 = vunpack.c.l.b16 %v1333
        %v1365 = vunpack.c.l.b16 %v1334
        %v1366 = vunpack.c.l.b16 %v1335
        %v1367 = vunpack.c.l.b16 %v1336
        %v1368 = vunpack.c.l.b16 %v1337
        %v1369 = vunpack.c.l.b16 %v1338
        %v1370 = vunpack.c.l.b16 %v1339
        %v1371 = vpack.c.b16 %v1364, %v1363
        %v1372 = vpack.c.b16 %v1366, %v1365
        %v1373 = vpack.c.b16 %v1368, %v1367
        %v1374 = vpack.c.b16 %v1370, %v1369
        %v1380 = vsel %vm637, %v1341, 0
        %v1383 = vsel %vm637, %v1342, 0
        %v1386 = vsel %vm637, %v1343, 0
        %v1389 = vsel %vm637, %v1344, 0
        %v1392 = vsel %vm637, %v1345, 0
        %v1395 = vsel %vm637, %v1346, 0
        %v1398 = vsel %vm637, %v1347, 0
        %v1401 = vsel %vm637, %v1348, 0
        %1403 = vmatprep.subr.bf16.mxu0 0
        %1404 = vmatpush1.bf16.msra.mxu0 0
        %1405 = vmatprep.subr.bf16.mxu0 0
        %1406 = vmatpush1.bf16.msra.mxu0 0
        %1407 = vmatprep.subr.bf16.mxu0 0
        %1408 = vmatpush1.bf16.msra.mxu0 0
        %1409 = vmatprep.subr.bf16.mxu0 0
        %1410 = vmatpush1.bf16.msra.mxu0 0
        %1411 = vmatprep.subr.bf16.mxu0 0
        %1412 = vmatpush1.bf16.msra.mxu0 %v1374
        %1413 = vmatprep.subr.bf16.mxu0 0
        %1414 = vmatpush1.bf16.msra.mxu0 %v1373
        %1415 = vmatprep.subr.bf16.mxu0 0
        %1416 = vmatpush1.bf16.msra.mxu0 %v1372
        %1417 = vmatprep.subr.bf16.mxu0 0
        %1418 = vmatpush1.bf16.msra.mxu0 %v1371
        %1419 = vmatprep.subr.bf16.mxu0 0
        %1420 = vmatpush2.bf16.msra.mxu0 0
        %1421 = vmatprep.subr.bf16.mxu0 0
        %1422 = vmatpush2.bf16.msra.mxu0 0
        %1423 = vmatprep.subr.bf16.mxu0 0
        %1424 = vmatpush2.bf16.msra.mxu0 0
        %1425 = vmatprep.subr.bf16.mxu0 0
        %1426 = vmatpush2.bf16.msra.mxu0 0
        %1427 = vmatprep.subr.bf16.mxu0 0
        %1428 = vmatpush2.bf16.msra.mxu0 0
        %1429 = vmatprep.subr.bf16.mxu0 0
        %1430 = vmatpush2.bf16.msra.mxu0 0
        %1431 = vmatprep.subr.bf16.mxu0 0
        %1432 = vmatpush2.bf16.msra.mxu0 0
        %1433 = vmatprep.subr.bf16.mxu0 0
        %1434 = vmatpush2.bf16.msra.mxu0 0
        %1435 = vmatprep.mubr.bf16.mxu0 0
        %1436 = vmatmul.mubr.bf16.gmra.mxu0 %v1380
        %v1437 = vpop.f32.mrf.mxu0
        %v1438 = vadd.f32 %v1353, %v1437
        %v1439 = vpop.f32.mrf.mxu0
        %v1440 = vpop.f32.mrf.mxu0
        %v1441 = vadd.f32 %v1353, %v1440
        %v1442 = vpop.f32.mrf.mxu0
        %1443 = vmatprep.mubr.bf16.mxu0 0
        %1444 = vmatmul.mubr.bf16.gmra.mxu0 %v1383
        %v1445 = vpop.f32.mrf.mxu0
        %v1446 = vadd.f32 %v1353, %v1445
        %v1447 = vpop.f32.mrf.mxu0
        %v1448 = vpop.f32.mrf.mxu0
        %v1449 = vadd.f32 %v1353, %v1448
        %v1450 = vpop.f32.mrf.mxu0
        %1451 = vmatprep.mubr.bf16.mxu0 0
        %1452 = vmatmul.mubr.bf16.gmra.mxu0 %v1386
        %v1453 = vpop.f32.mrf.mxu0
        %v1454 = vadd.f32 %v1353, %v1453
        %v1455 = vpop.f32.mrf.mxu0
        %v1456 = vpop.f32.mrf.mxu0
        %v1457 = vadd.f32 %v1353, %v1456
        %v1458 = vpop.f32.mrf.mxu0
        %1459 = vmatprep.mubr.bf16.mxu0 0
        %1460 = vmatmul.mubr.bf16.gmra.mxu0 %v1389
        %v1461 = vpop.f32.mrf.mxu0
        %v1462 = vadd.f32 %v1353, %v1461
        %v1463 = vpop.f32.mrf.mxu0
        %v1464 = vpop.f32.mrf.mxu0
        %v1465 = vadd.f32 %v1353, %v1464
        %v1466 = vpop.f32.mrf.mxu0
        %1467 = vmatprep.mubr.bf16.mxu0 0
        %1468 = vmatmul.mubr.bf16.gmra.mxu0 %v1392
        %v1469 = vpop.f32.mrf.mxu0
        %v1470 = vadd.f32 %v1353, %v1469
        %v1471 = vpop.f32.mrf.mxu0
        %v1472 = vpop.f32.mrf.mxu0
        %v1473 = vadd.f32 %v1353, %v1472
        %v1474 = vpop.f32.mrf.mxu0
        %1475 = vmatprep.mubr.bf16.mxu0 0
        %1476 = vmatmul.mubr.bf16.gmra.mxu0 %v1395
        %v1477 = vpop.f32.mrf.mxu0
        %v1478 = vadd.f32 %v1353, %v1477
        %v1479 = vpop.f32.mrf.mxu0
        %v1480 = vpop.f32.mrf.mxu0
        %v1481 = vadd.f32 %v1353, %v1480
        %v1482 = vpop.f32.mrf.mxu0
        %1483 = vmatprep.mubr.bf16.mxu0 0
        %1484 = vmatmul.mubr.bf16.gmra.mxu0 %v1398
        %v1485 = vpop.f32.mrf.mxu0
        %v1486 = vadd.f32 %v1353, %v1485
        %v1487 = vpop.f32.mrf.mxu0
        %v1488 = vpop.f32.mrf.mxu0
        %v1489 = vadd.f32 %v1353, %v1488
        %v1490 = vpop.f32.mrf.mxu0
        %1491 = vmatprep.mubr.bf16.mxu0 0
        %1492 = vmatmul.mubr.bf16.gmra.mxu0 %v1401
        %v1493 = vpop.f32.mrf.mxu0
        %v1494 = vadd.f32 %v1353, %v1493
        %v1495 = vpop.f32.mrf.mxu0
        %v1496 = vpop.f32.mrf.mxu0
        %v1497 = vadd.f32 %v1353, %v1496
        %v1498 = vpop.f32.mrf.mxu0
        %1499 = vdwg.mxu0
        %v1500 = vtanh.pop %v1438
        %v1501 = vtanh.pop %v1441
        %v1502 = vtanh.pop %v1446
        %v1503 = vtanh.pop %v1449
        %v1504 = vtanh.pop %v1454
        %v1505 = vtanh.pop %v1457
        %v1506 = vtanh.pop %v1462
        %v1507 = vtanh.pop %v1465
        %v1508 = vtanh.pop %v1470
        %v1509 = vtanh.pop %v1473
        %v1510 = vtanh.pop %v1478
        %v1511 = vtanh.pop %v1481
        %v1512 = vtanh.pop %v1486
        %v1513 = vtanh.pop %v1489
        %v1514 = vtanh.pop %v1494
        %v1515 = vtanh.pop %v1497
        %v1516 = vld [vmem:[%s3] sm:$0xff]
        %v1517 = vld [vmem:[%s3 + $0x8] sm:$0xff]
        %v1518 = vld [vmem:[%s3 + $0x10] sm:$0xff]
        %v1519 = vld [vmem:[%s3 + $0x18] sm:$0xff]
        %v1520 = vld [vmem:[%s3 + $0x20] sm:$0xff]
        %v1521 = vld [vmem:[%s3 + $0x28] sm:$0xff]
        %v1522 = vld [vmem:[%s3 + $0x30] sm:$0xff]
        %v1523 = vld [vmem:[%s3 + $0x38] sm:$0xff]
        %v1524 = vld [vmem:[%s4 + $0x2] sm:$0x7]
        %v1525 = vpack.c.bf16 %v1501, %v1500
        %v1526 = vpack.c.bf16 %v1503, %v1502
        %v1527 = vpack.c.bf16 %v1505, %v1504
        %v1528 = vpack.c.bf16 %v1507, %v1506
        %v1529 = vpack.c.bf16 %v1509, %v1508
        %v1530 = vpack.c.bf16 %v1511, %v1510
        %v1531 = vpack.c.bf16 %v1513, %v1512
        %v1532 = vpack.c.bf16 %v1515, %v1514
        %v1534 = vlaneseq
        %v1535 = vshrl.u32 %v1534, 7
        %v1536 = vsub.s32 0, %v1535
        %v1537 = vrot.slane %v1524, %v1536
        %v1538 = vlaneseq
        %v1539 = vshrl.u32 %v1538, 7
        %v1540 = vsub.s32 1, %v1539
        %v1541 = vrot.slane %v1524, %v1540
        %v1542 = vlaneseq
        %v1543 = vshrl.u32 %v1542, 7
        %v1544 = vsub.s32 2, %v1543
        %v1545 = vrot.slane %v1524, %v1544
        %v1554 = vunpack.c.l.b16 %v1516
        %v1555 = vunpack.c.h.b16 %v1516
        %v1556 = vunpack.c.l.b16 %v1517
        %v1557 = vunpack.c.h.b16 %v1517
        %v1558 = vunpack.c.l.b16 %v1518
        %v1559 = vunpack.c.h.b16 %v1518
        %v1560 = vunpack.c.l.b16 %v1519
        %v1561 = vunpack.c.h.b16 %v1519
        %v1562 = vunpack.c.l.b16 %v1520
        %v1563 = vunpack.c.h.b16 %v1520
        %v1564 = vunpack.c.l.b16 %v1521
        %v1565 = vunpack.c.h.b16 %v1521
        %v1566 = vunpack.c.l.b16 %v1522
        %v1567 = vunpack.c.h.b16 %v1522
        %v1568 = vunpack.c.l.b16 %v1523
        %v1569 = vunpack.c.h.b16 %v1523
        %v1570 = vpack.c.b16 %v1556, %v1554
        %v1571 = vpack.c.b16 %v1557, %v1555
        %v1572 = vpack.c.b16 %v1560, %v1558
        %v1573 = vpack.c.b16 %v1561, %v1559
        %v1574 = vpack.c.b16 %v1564, %v1562
        %v1575 = vpack.c.b16 %v1565, %v1563
        %v1576 = vpack.c.b16 %v1568, %v1566
        %v1577 = vpack.c.b16 %v1569, %v1567
        %1586 = vrot.lane.b32.xlu0 %v1537, 64
        %v1587 = vpop.permute.xlu0 %1586
        %1588 = vrot.lane.b32.xlu0 %v1541, 64
        %v1589 = vpop.permute.xlu0 %1588
        %1590 = vrot.lane.b32.xlu0 %v1545, 64
        %v1591 = vpop.permute.xlu0 %1590
        %v1592 = vsel %vm637, %v1587, %v1589
        %v1593 = vsel %vm637, %v1589, %v1591
        %v1597 = vsel %vm637, %v1525, 0
        %v1600 = vsel %vm637, %v1526, 0
        %v1603 = vsel %vm637, %v1527, 0
        %v1606 = vsel %vm637, %v1528, 0
        %v1609 = vsel %vm637, %v1529, 0
        %v1612 = vsel %vm637, %v1530, 0
        %v1615 = vsel %vm637, %v1531, 0
        %v1618 = vsel %vm637, %v1532, 0
        %1620 = vmatprep.subr.bf16.mxu0 0
        %1621 = vmatpush1.bf16.msra.mxu0 0
        %1622 = vmatprep.subr.bf16.mxu0 0
        %1623 = vmatpush1.bf16.msra.mxu0 0
        %1624 = vmatprep.subr.bf16.mxu0 0
        %1625 = vmatpush1.bf16.msra.mxu0 0
        %1626 = vmatprep.subr.bf16.mxu0 0
        %1627 = vmatpush1.bf16.msra.mxu0 0
        %1628 = vmatprep.subr.bf16.mxu0 %v1577
        %1629 = vmatpush1.bf16.msra.mxu0 %v1576
        %1630 = vmatprep.subr.bf16.mxu0 %v1575
        %1631 = vmatpush1.bf16.msra.mxu0 %v1574
        %1632 = vmatprep.subr.bf16.mxu0 %v1573
        %1633 = vmatpush1.bf16.msra.mxu0 %v1572
        %1634 = vmatprep.subr.bf16.mxu0 %v1571
        %1635 = vmatpush1.bf16.msra.mxu0 %v1570
        %1636 = vmatprep.subr.bf16.mxu0 0
        %1637 = vmatpush2.bf16.msra.mxu0 0
        %1638 = vmatprep.subr.bf16.mxu0 0
        %1639 = vmatpush2.bf16.msra.mxu0 0
        %1640 = vmatprep.subr.bf16.mxu0 0
        %1641 = vmatpush2.bf16.msra.mxu0 0
        %1642 = vmatprep.subr.bf16.mxu0 0
        %1643 = vmatpush2.bf16.msra.mxu0 0
        %1644 = vmatprep.subr.bf16.mxu0 0
        %1645 = vmatpush2.bf16.msra.mxu0 0
        %1646 = vmatprep.subr.bf16.mxu0 0
        %1647 = vmatpush2.bf16.msra.mxu0 0
        %1648 = vmatprep.subr.bf16.mxu0 0
        %1649 = vmatpush2.bf16.msra.mxu0 0
        %1650 = vmatprep.subr.bf16.mxu0 0
        %1651 = vmatpush2.bf16.msra.mxu0 0
        %1652 = vmatprep.mubr.bf16.mxu0 0
        %1653 = vmatmul.mubr.bf16.gmra.mxu0 %v1597
        %v1654 = vpop.f32.mrf.mxu0
        %v1655 = vadd.f32 %v1592, %v1654
        %v1656 = vpop.f32.mrf.mxu0
        %v1657 = vadd.f32 %v1593, %v1656
        %v1658 = vpop.f32.mrf.mxu0
        %v1659 = vadd.f32 %v1592, %v1658
        %v1660 = vpop.f32.mrf.mxu0
        %v1661 = vadd.f32 %v1593, %v1660
        %1662 = vmatprep.mubr.bf16.mxu0 0
        %1663 = vmatmul.mubr.bf16.gmra.mxu0 %v1600
        %v1664 = vpop.f32.mrf.mxu0
        %v1665 = vadd.f32 %v1592, %v1664
        %v1666 = vpop.f32.mrf.mxu0
        %v1667 = vadd.f32 %v1593, %v1666
        %v1668 = vpop.f32.mrf.mxu0
        %v1669 = vadd.f32 %v1592, %v1668
        %v1670 = vpop.f32.mrf.mxu0
        %v1671 = vadd.f32 %v1593, %v1670
        %1672 = vmatprep.mubr.bf16.mxu0 0
        %1673 = vmatmul.mubr.bf16.gmra.mxu0 %v1603
        %v1674 = vpop.f32.mrf.mxu0
        %v1675 = vadd.f32 %v1592, %v1674
        %v1676 = vpop.f32.mrf.mxu0
        %v1677 = vadd.f32 %v1593, %v1676
        %v1678 = vpop.f32.mrf.mxu0
        %v1679 = vadd.f32 %v1592, %v1678
        %v1680 = vpop.f32.mrf.mxu0
        %v1681 = vadd.f32 %v1593, %v1680
        %1682 = vmatprep.mubr.bf16.mxu0 0
        %1683 = vmatmul.mubr.bf16.gmra.mxu0 %v1606
        %v1684 = vpop.f32.mrf.mxu0
        %v1685 = vadd.f32 %v1592, %v1684
        %v1686 = vpop.f32.mrf.mxu0
        %v1687 = vadd.f32 %v1593, %v1686
        %v1688 = vpop.f32.mrf.mxu0
        %v1689 = vadd.f32 %v1592, %v1688
        %v1690 = vpop.f32.mrf.mxu0
        %v1691 = vadd.f32 %v1593, %v1690
        %1692 = vmatprep.mubr.bf16.mxu0 0
        %1693 = vmatmul.mubr.bf16.gmra.mxu0 %v1609
        %v1694 = vpop.f32.mrf.mxu0
        %v1695 = vadd.f32 %v1592, %v1694
        %v1696 = vpop.f32.mrf.mxu0
        %v1697 = vadd.f32 %v1593, %v1696
        %v1698 = vpop.f32.mrf.mxu0
        %v1699 = vadd.f32 %v1592, %v1698
        %v1700 = vpop.f32.mrf.mxu0
        %v1701 = vadd.f32 %v1593, %v1700
        %1702 = vmatprep.mubr.bf16.mxu0 0
        %1703 = vmatmul.mubr.bf16.gmra.mxu0 %v1612
        %v1704 = vpop.f32.mrf.mxu0
        %v1705 = vadd.f32 %v1592, %v1704
        %v1706 = vpop.f32.mrf.mxu0
        %v1707 = vadd.f32 %v1593, %v1706
        %v1708 = vpop.f32.mrf.mxu0
        %v1709 = vadd.f32 %v1592, %v1708
        %v1710 = vpop.f32.mrf.mxu0
        %v1711 = vadd.f32 %v1593, %v1710
        %1712 = vmatprep.mubr.bf16.mxu0 0
        %1713 = vmatmul.mubr.bf16.gmra.mxu0 %v1615
        %v1714 = vpop.f32.mrf.mxu0
        %v1715 = vadd.f32 %v1592, %v1714
        %v1716 = vpop.f32.mrf.mxu0
        %v1717 = vadd.f32 %v1593, %v1716
        %v1718 = vpop.f32.mrf.mxu0
        %v1719 = vadd.f32 %v1592, %v1718
        %v1720 = vpop.f32.mrf.mxu0
        %v1721 = vadd.f32 %v1593, %v1720
        %1722 = vmatprep.mubr.bf16.mxu0 0
        %1723 = vmatmul.mubr.bf16.gmra.mxu0 %v1618
        %v1724 = vpop.f32.mrf.mxu0
        %v1725 = vadd.f32 %v1592, %v1724
        %v1726 = vpop.f32.mrf.mxu0
        %v1727 = vadd.f32 %v1593, %v1726
        %v1728 = vpop.f32.mrf.mxu0
        %v1729 = vadd.f32 %v1592, %v1728
        %v1730 = vpop.f32.mrf.mxu0
        %v1731 = vadd.f32 %v1593, %v1730
        %1732 = vdwg.mxu0
        %v1733 = vunpack.c.l.bf16 %v250
        %v1734 = vunpack.c.h.bf16 %v250
        %v1735 = vunpack.c.l.bf16 %v251
        %v1736 = vunpack.c.h.bf16 %v251
        %v1737 = vunpack.c.l.bf16 %v252
        %v1738 = vunpack.c.h.bf16 %v252
        %v1739 = vunpack.c.l.bf16 %v253
        %v1740 = vunpack.c.h.bf16 %v253
        %v1741 = vunpack.c.l.bf16 %v254
        %v1742 = vunpack.c.h.bf16 %v254
        %v1743 = vunpack.c.l.bf16 %v255
        %v1744 = vunpack.c.h.bf16 %v255
        %v1745 = vunpack.c.l.bf16 %v256
        %v1746 = vunpack.c.h.bf16 %v256
        %v1747 = vunpack.c.l.bf16 %v257
        %v1748 = vunpack.c.h.bf16 %v257
        %v1749 = vunpack.c.l.bf16 %v258
        %v1750 = vunpack.c.h.bf16 %v258
        %v1751 = vunpack.c.l.bf16 %v259
        %v1752 = vunpack.c.h.bf16 %v259
        %v1753 = vunpack.c.l.bf16 %v260
        %v1754 = vunpack.c.h.bf16 %v260
        %v1755 = vunpack.c.l.bf16 %v261
        %v1756 = vunpack.c.h.bf16 %v261
        %v1757 = vunpack.c.l.bf16 %v262
        %v1758 = vunpack.c.h.bf16 %v262
        %v1759 = vunpack.c.l.bf16 %v263
        %v1760 = vunpack.c.h.bf16 %v263
        %v1761 = vunpack.c.l.bf16 %v264
        %v1762 = vunpack.c.h.bf16 %v264
        %v1763 = vunpack.c.l.bf16 %v265
        %v1764 = vunpack.c.h.bf16 %v265
        %v1765 = vmul.f32 %v1733, 2.0
        %v1766 = vmul.f32 %v1734, 2.0
        %v1767 = vmul.f32 %v1735, 2.0
        %v1768 = vmul.f32 %v1736, 2.0
        %v1769 = vmul.f32 %v1737, 2.0
        %v1770 = vmul.f32 %v1738, 2.0
        %v1771 = vmul.f32 %v1739, 2.0
        %v1772 = vmul.f32 %v1740, 2.0
        %v1773 = vmul.f32 %v1741, 2.0
        %v1774 = vmul.f32 %v1742, 2.0
        %v1775 = vmul.f32 %v1743, 2.0
        %v1776 = vmul.f32 %v1744, 2.0
        %v1777 = vmul.f32 %v1745, 2.0
        %v1778 = vmul.f32 %v1746, 2.0
        %v1779 = vmul.f32 %v1747, 2.0
        %v1780 = vmul.f32 %v1748, 2.0
        %v1781 = vmul.f32 %v1749, 2.0
        %v1782 = vmul.f32 %v1750, 2.0
        %v1783 = vmul.f32 %v1751, 2.0
        %v1784 = vmul.f32 %v1752, 2.0
        %v1785 = vmul.f32 %v1753, 2.0
        %v1786 = vmul.f32 %v1754, 2.0
        %v1787 = vmul.f32 %v1755, 2.0
        %v1788 = vmul.f32 %v1756, 2.0
        %v1789 = vmul.f32 %v1757, 2.0
        %v1790 = vmul.f32 %v1758, 2.0
        %v1791 = vmul.f32 %v1759, 2.0
        %v1792 = vmul.f32 %v1760, 2.0
        %v1793 = vmul.f32 %v1761, 2.0
        %v1794 = vmul.f32 %v1762, 2.0
        %v1795 = vmul.f32 %v1763, 2.0
        %v1796 = vmul.f32 %v1764, 2.0
        %v1797 = vsub.f32 1.0, %v1765
        %v1798 = vsub.f32 1.0, %v1766
        %v1799 = vsub.f32 1.0, %v1767
        %v1800 = vsub.f32 1.0, %v1768
        %v1801 = vsub.f32 1.0, %v1769
        %v1802 = vsub.f32 1.0, %v1770
        %v1803 = vsub.f32 1.0, %v1771
        %v1804 = vsub.f32 1.0, %v1772
        %v1805 = vsub.f32 1.0, %v1773
        %v1806 = vsub.f32 1.0, %v1774
        %v1807 = vsub.f32 1.0, %v1775
        %v1808 = vsub.f32 1.0, %v1776
        %v1809 = vsub.f32 1.0, %v1777
        %v1810 = vsub.f32 1.0, %v1778
        %v1811 = vsub.f32 1.0, %v1779
        %v1812 = vsub.f32 1.0, %v1780
        %v1813 = vsub.f32 1.0, %v1781
        %v1814 = vsub.f32 1.0, %v1782
        %v1815 = vsub.f32 1.0, %v1783
        %v1816 = vsub.f32 1.0, %v1784
        %v1817 = vsub.f32 1.0, %v1785
        %v1818 = vsub.f32 1.0, %v1786
        %v1819 = vsub.f32 1.0, %v1787
        %v1820 = vsub.f32 1.0, %v1788
        %v1821 = vsub.f32 1.0, %v1789
        %v1822 = vsub.f32 1.0, %v1790
        %v1823 = vsub.f32 1.0, %v1791
        %v1824 = vsub.f32 1.0, %v1792
        %v1825 = vsub.f32 1.0, %v1793
        %v1826 = vsub.f32 1.0, %v1794
        %v1827 = vsub.f32 1.0, %v1795
        %v1828 = vsub.f32 1.0, %v1796
        %v1829 = vmul.f32 %v1797, %v1655
        %v1830 = vmul.f32 %v1798, %v1657
        %v1831 = vmul.f32 %v1799, %v1659
        %v1832 = vmul.f32 %v1800, %v1661
        %v1833 = vmul.f32 %v1801, %v1665
        %v1834 = vmul.f32 %v1802, %v1667
        %v1835 = vmul.f32 %v1803, %v1669
        %v1836 = vmul.f32 %v1804, %v1671
        %v1837 = vmul.f32 %v1805, %v1675
        %v1838 = vmul.f32 %v1806, %v1677
        %v1839 = vmul.f32 %v1807, %v1679
        %v1840 = vmul.f32 %v1808, %v1681
        %v1841 = vmul.f32 %v1809, %v1685
        %v1842 = vmul.f32 %v1810, %v1687
        %v1843 = vmul.f32 %v1811, %v1689
        %v1844 = vmul.f32 %v1812, %v1691
        %v1845 = vmul.f32 %v1813, %v1695
        %v1846 = vmul.f32 %v1814, %v1697
        %v1847 = vmul.f32 %v1815, %v1699
        %v1848 = vmul.f32 %v1816, %v1701
        %v1849 = vmul.f32 %v1817, %v1705
        %v1850 = vmul.f32 %v1818, %v1707
        %v1851 = vmul.f32 %v1819, %v1709
        %v1852 = vmul.f32 %v1820, %v1711
        %v1853 = vmul.f32 %v1821, %v1715
        %v1854 = vmul.f32 %v1822, %v1717
        %v1855 = vmul.f32 %v1823, %v1719
        %v1856 = vmul.f32 %v1824, %v1721
        %v1857 = vmul.f32 %v1825, %v1725
        %v1858 = vmul.f32 %v1826, %v1727
        %v1859 = vmul.f32 %v1827, %v1729
        %v1860 = vmul.f32 %v1828, %v1731
        %v1861 = vmax.f32 %v1829, 0.0
        %v1862 = vmax.f32 %v1830, 0.0
        %v1863 = vmax.f32 %v1831, 0.0
        %v1864 = vmax.f32 %v1832, 0.0
        %v1865 = vmax.f32 %v1833, 0.0
        %v1866 = vmax.f32 %v1834, 0.0
        %v1867 = vmax.f32 %v1835, 0.0
        %v1868 = vmax.f32 %v1836, 0.0
        %v1869 = vmax.f32 %v1837, 0.0
        %v1870 = vmax.f32 %v1838, 0.0
        %v1871 = vmax.f32 %v1839, 0.0
        %v1872 = vmax.f32 %v1840, 0.0
        %v1873 = vmax.f32 %v1841, 0.0
        %v1874 = vmax.f32 %v1842, 0.0
        %v1875 = vmax.f32 %v1843, 0.0
        %v1876 = vmax.f32 %v1844, 0.0
        %v1877 = vmax.f32 %v1845, 0.0
        %v1878 = vmax.f32 %v1846, 0.0
        %v1879 = vmax.f32 %v1847, 0.0
        %v1880 = vmax.f32 %v1848, 0.0
        %v1881 = vmax.f32 %v1849, 0.0
        %v1882 = vmax.f32 %v1850, 0.0
        %v1883 = vmax.f32 %v1851, 0.0
        %v1884 = vmax.f32 %v1852, 0.0
        %v1885 = vmax.f32 %v1853, 0.0
        %v1886 = vmax.f32 %v1854, 0.0
        %v1887 = vmax.f32 %v1855, 0.0
        %v1888 = vmax.f32 %v1856, 0.0
        %v1889 = vmax.f32 %v1857, 0.0
        %v1890 = vmax.f32 %v1858, 0.0
        %v1891 = vmax.f32 %v1859, 0.0
        %v1892 = vmax.f32 %v1860, 0.0
        %v1893 = vand.u32 2147483647, %v1829
        %v1894 = vand.u32 2147483647, %v1830
        %v1895 = vand.u32 2147483647, %v1831
        %v1896 = vand.u32 2147483647, %v1832
        %v1897 = vand.u32 2147483647, %v1833
        %v1898 = vand.u32 2147483647, %v1834
        %v1899 = vand.u32 2147483647, %v1835
        %v1900 = vand.u32 2147483647, %v1836
        %v1901 = vand.u32 2147483647, %v1837
        %v1902 = vand.u32 2147483647, %v1838
        %v1903 = vand.u32 2147483647, %v1839
        %v1904 = vand.u32 2147483647, %v1840
        %v1905 = vand.u32 2147483647, %v1841
        %v1906 = vand.u32 2147483647, %v1842
        %v1907 = vand.u32 2147483647, %v1843
        %v1908 = vand.u32 2147483647, %v1844
        %v1909 = vand.u32 2147483647, %v1845
        %v1910 = vand.u32 2147483647, %v1846
        %v1911 = vand.u32 2147483647, %v1847
        %v1912 = vand.u32 2147483647, %v1848
        %v1913 = vand.u32 2147483647, %v1849
        %v1914 = vand.u32 2147483647, %v1850
        %v1915 = vand.u32 2147483647, %v1851
        %v1916 = vand.u32 2147483647, %v1852
        %v1917 = vand.u32 2147483647, %v1853
        %v1918 = vand.u32 2147483647, %v1854
        %v1919 = vand.u32 2147483647, %v1855
        %v1920 = vand.u32 2147483647, %v1856
        %v1921 = vand.u32 2147483647, %v1857
        %v1922 = vand.u32 2147483647, %v1858
        %v1923 = vand.u32 2147483647, %v1859
        %v1924 = vand.u32 2147483647, %v1860
        %v1925 = vsub.f32 0.0, %v1893
        %v1926 = vsub.f32 0.0, %v1894
        %v1927 = vsub.f32 0.0, %v1895
        %v1928 = vsub.f32 0.0, %v1896
        %v1929 = vsub.f32 0.0, %v1897
        %v1930 = vsub.f32 0.0, %v1898
        %v1931 = vsub.f32 0.0, %v1899
        %v1932 = vsub.f32 0.0, %v1900
        %v1933 = vsub.f32 0.0, %v1901
        %v1934 = vsub.f32 0.0, %v1902
        %v1935 = vsub.f32 0.0, %v1903
        %v1936 = vsub.f32 0.0, %v1904
        %v1937 = vsub.f32 0.0, %v1905
        %v1938 = vsub.f32 0.0, %v1906
        %v1939 = vsub.f32 0.0, %v1907
        %v1940 = vsub.f32 0.0, %v1908
        %v1941 = vsub.f32 0.0, %v1909
        %v1942 = vsub.f32 0.0, %v1910
        %v1943 = vsub.f32 0.0, %v1911
        %v1944 = vsub.f32 0.0, %v1912
        %v1945 = vsub.f32 0.0, %v1913
        %v1946 = vsub.f32 0.0, %v1914
        %v1947 = vsub.f32 0.0, %v1915
        %v1948 = vsub.f32 0.0, %v1916
        %v1949 = vsub.f32 0.0, %v1917
        %v1950 = vsub.f32 0.0, %v1918
        %v1951 = vsub.f32 0.0, %v1919
        %v1952 = vsub.f32 0.0, %v1920
        %v1953 = vsub.f32 0.0, %v1921
        %v1954 = vsub.f32 0.0, %v1922
        %v1955 = vsub.f32 0.0, %v1923
        %v1956 = vsub.f32 0.0, %v1924
        %v1957 = vmul.f32 %v1925, 1.442695
        %v1958 = vpow.pop %v1957
        %v1959 = vmul.f32 %v1926, 1.442695
        %v1960 = vpow.pop %v1959
        %v1961 = vmul.f32 %v1927, 1.442695
        %v1962 = vpow.pop %v1961
        %v1963 = vmul.f32 %v1928, 1.442695
        %v1964 = vpow.pop %v1963
        %v1965 = vmul.f32 %v1929, 1.442695
        %v1966 = vpow.pop %v1965
        %v1967 = vmul.f32 %v1930, 1.442695
        %v1968 = vpow.pop %v1967
        %v1969 = vmul.f32 %v1931, 1.442695
        %v1970 = vpow.pop %v1969
        %v1971 = vmul.f32 %v1932, 1.442695
        %v1972 = vpow.pop %v1971
        %v1973 = vmul.f32 %v1933, 1.442695
        %v1974 = vpow.pop %v1973
        %v1975 = vmul.f32 %v1934, 1.442695
        %v1976 = vpow.pop %v1975
        %v1977 = vmul.f32 %v1935, 1.442695
        %v1978 = vpow.pop %v1977
        %v1979 = vmul.f32 %v1936, 1.442695
        %v1980 = vpow.pop %v1979
        %v1981 = vmul.f32 %v1937, 1.442695
        %v1982 = vpow.pop %v1981
        %v1983 = vmul.f32 %v1938, 1.442695
        %v1984 = vpow.pop %v1983
        %v1985 = vmul.f32 %v1939, 1.442695
        %v1986 = vpow.pop %v1985
        %v1987 = vmul.f32 %v1940, 1.442695
        %v1988 = vpow.pop %v1987
        %v1989 = vmul.f32 %v1941, 1.442695
        %v1990 = vpow.pop %v1989
        %v1991 = vmul.f32 %v1942, 1.442695
        %v1992 = vpow.pop %v1991
        %v1993 = vmul.f32 %v1943, 1.442695
        %v1994 = vpow.pop %v1993
        %v1995 = vmul.f32 %v1944, 1.442695
        %v1996 = vpow.pop %v1995
        %v1997 = vmul.f32 %v1945, 1.442695
        %v1998 = vpow.pop %v1997
        %v1999 = vmul.f32 %v1946, 1.442695
        %v2000 = vpow.pop %v1999
        %v2001 = vmul.f32 %v1947, 1.442695
        %v2002 = vpow.pop %v2001
        %v2003 = vmul.f32 %v1948, 1.442695
        %v2004 = vpow.pop %v2003
        %v2005 = vmul.f32 %v1949, 1.442695
        %v2006 = vpow.pop %v2005
        %v2007 = vmul.f32 %v1950, 1.442695
        %v2008 = vpow.pop %v2007
        %v2009 = vmul.f32 %v1951, 1.442695
        %v2010 = vpow.pop %v2009
        %v2011 = vmul.f32 %v1952, 1.442695
        %v2012 = vpow.pop %v2011
        %v2013 = vmul.f32 %v1953, 1.442695
        %v2014 = vpow.pop %v2013
        %v2015 = vmul.f32 %v1954, 1.442695
        %v2016 = vpow.pop %v2015
        %v2017 = vmul.f32 %v1955, 1.442695
        %v2018 = vpow.pop %v2017
        %v2019 = vmul.f32 %v1956, 1.442695
        %v2020 = vpow.pop %v2019
        %v2021 = vadd.f32 %v1958, 1.0
        %v2022 = vlog2.pop %v2021
        %v2023 = vmul.f32 %v2022, 0.6931472
        %v2024 = vmul.f32 -0.5, %v1958
        %v2025 = vadd.f32 %v2024, 1.0
        %v2026 = vmul.f32 %v2025, %v1958
        %v2027 = vand.u32 2147483647, %v1958
        %vm2028 = vcmp.lt.f32.partialorder %v2027, 0.0004427343
        %v2029 = vsel %vm2028, %v2026, %v2023
        %v2030 = vadd.f32 %v1960, 1.0
        %v2031 = vlog2.pop %v2030
        %v2032 = vmul.f32 %v2031, 0.6931472
        %v2033 = vmul.f32 -0.5, %v1960
        %v2034 = vadd.f32 %v2033, 1.0
        %v2035 = vmul.f32 %v2034, %v1960
        %v2036 = vand.u32 2147483647, %v1960
        %vm2037 = vcmp.lt.f32.partialorder %v2036, 0.0004427343
        %v2038 = vsel %vm2037, %v2035, %v2032
        %v2039 = vadd.f32 %v1962, 1.0
        %v2040 = vlog2.pop %v2039
        %v2041 = vmul.f32 %v2040, 0.6931472
        %v2042 = vmul.f32 -0.5, %v1962
        %v2043 = vadd.f32 %v2042, 1.0
        %v2044 = vmul.f32 %v2043, %v1962
        %v2045 = vand.u32 2147483647, %v1962
        %vm2046 = vcmp.lt.f32.partialorder %v2045, 0.0004427343
        %v2047 = vsel %vm2046, %v2044, %v2041
        %v2048 = vadd.f32 %v1964, 1.0
        %v2049 = vlog2.pop %v2048
        %v2050 = vmul.f32 %v2049, 0.6931472
        %v2051 = vmul.f32 -0.5, %v1964
        %v2052 = vadd.f32 %v2051, 1.0
        %v2053 = vmul.f32 %v2052, %v1964
        %v2054 = vand.u32 2147483647, %v1964
        %vm2055 = vcmp.lt.f32.partialorder %v2054, 0.0004427343
        %v2056 = vsel %vm2055, %v2053, %v2050
        %v2057 = vadd.f32 %v1966, 1.0
        %v2058 = vlog2.pop %v2057
        %v2059 = vmul.f32 %v2058, 0.6931472
        %v2060 = vmul.f32 -0.5, %v1966
        %v2061 = vadd.f32 %v2060, 1.0
        %v2062 = vmul.f32 %v2061, %v1966
        %v2063 = vand.u32 2147483647, %v1966
        %vm2064 = vcmp.lt.f32.partialorder %v2063, 0.0004427343
        %v2065 = vsel %vm2064, %v2062, %v2059
        %v2066 = vadd.f32 %v1968, 1.0
        %v2067 = vlog2.pop %v2066
        %v2068 = vmul.f32 %v2067, 0.6931472
        %v2069 = vmul.f32 -0.5, %v1968
        %v2070 = vadd.f32 %v2069, 1.0
        %v2071 = vmul.f32 %v2070, %v1968
        %v2072 = vand.u32 2147483647, %v1968
        %vm2073 = vcmp.lt.f32.partialorder %v2072, 0.0004427343
        %v2074 = vsel %vm2073, %v2071, %v2068
        %v2075 = vadd.f32 %v1970, 1.0
        %v2076 = vlog2.pop %v2075
        %v2077 = vmul.f32 %v2076, 0.6931472
        %v2078 = vmul.f32 -0.5, %v1970
        %v2079 = vadd.f32 %v2078, 1.0
        %v2080 = vmul.f32 %v2079, %v1970
        %v2081 = vand.u32 2147483647, %v1970
        %vm2082 = vcmp.lt.f32.partialorder %v2081, 0.0004427343
        %v2083 = vsel %vm2082, %v2080, %v2077
        %v2084 = vadd.f32 %v1972, 1.0
        %v2085 = vlog2.pop %v2084
        %v2086 = vmul.f32 %v2085, 0.6931472
        %v2087 = vmul.f32 -0.5, %v1972
        %v2088 = vadd.f32 %v2087, 1.0
        %v2089 = vmul.f32 %v2088, %v1972
        %v2090 = vand.u32 2147483647, %v1972
        %vm2091 = vcmp.lt.f32.partialorder %v2090, 0.0004427343
        %v2092 = vsel %vm2091, %v2089, %v2086
        %v2093 = vadd.f32 %v1974, 1.0
        %v2094 = vlog2.pop %v2093
        %v2095 = vmul.f32 %v2094, 0.6931472
        %v2096 = vmul.f32 -0.5, %v1974
        %v2097 = vadd.f32 %v2096, 1.0
        %v2098 = vmul.f32 %v2097, %v1974
        %v2099 = vand.u32 2147483647, %v1974
        %vm2100 = vcmp.lt.f32.partialorder %v2099, 0.0004427343
        %v2101 = vsel %vm2100, %v2098, %v2095
        %v2102 = vadd.f32 %v1976, 1.0
        %v2103 = vlog2.pop %v2102
        %v2104 = vmul.f32 %v2103, 0.6931472
        %v2105 = vmul.f32 -0.5, %v1976
        %v2106 = vadd.f32 %v2105, 1.0
        %v2107 = vmul.f32 %v2106, %v1976
        %v2108 = vand.u32 2147483647, %v1976
        %vm2109 = vcmp.lt.f32.partialorder %v2108, 0.0004427343
        %v2110 = vsel %vm2109, %v2107, %v2104
        %v2111 = vadd.f32 %v1978, 1.0
        %v2112 = vlog2.pop %v2111
        %v2113 = vmul.f32 %v2112, 0.6931472
        %v2114 = vmul.f32 -0.5, %v1978
        %v2115 = vadd.f32 %v2114, 1.0
        %v2116 = vmul.f32 %v2115, %v1978
        %v2117 = vand.u32 2147483647, %v1978
        %vm2118 = vcmp.lt.f32.partialorder %v2117, 0.0004427343
        %v2119 = vsel %vm2118, %v2116, %v2113
        %v2120 = vadd.f32 %v1980, 1.0
        %v2121 = vlog2.pop %v2120
        %v2122 = vmul.f32 %v2121, 0.6931472
        %v2123 = vmul.f32 -0.5, %v1980
        %v2124 = vadd.f32 %v2123, 1.0
        %v2125 = vmul.f32 %v2124, %v1980
        %v2126 = vand.u32 2147483647, %v1980
        %vm2127 = vcmp.lt.f32.partialorder %v2126, 0.0004427343
        %v2128 = vsel %vm2127, %v2125, %v2122
        %v2129 = vadd.f32 %v1982, 1.0
        %v2130 = vlog2.pop %v2129
        %v2131 = vmul.f32 %v2130, 0.6931472
        %v2132 = vmul.f32 -0.5, %v1982
        %v2133 = vadd.f32 %v2132, 1.0
        %v2134 = vmul.f32 %v2133, %v1982
        %v2135 = vand.u32 2147483647, %v1982
        %vm2136 = vcmp.lt.f32.partialorder %v2135, 0.0004427343
        %v2137 = vsel %vm2136, %v2134, %v2131
        %v2138 = vadd.f32 %v1984, 1.0
        %v2139 = vlog2.pop %v2138
        %v2140 = vmul.f32 %v2139, 0.6931472
        %v2141 = vmul.f32 -0.5, %v1984
        %v2142 = vadd.f32 %v2141, 1.0
        %v2143 = vmul.f32 %v2142, %v1984
        %v2144 = vand.u32 2147483647, %v1984
        %vm2145 = vcmp.lt.f32.partialorder %v2144, 0.0004427343
        %v2146 = vsel %vm2145, %v2143, %v2140
        %v2147 = vadd.f32 %v1986, 1.0
        %v2148 = vlog2.pop %v2147
        %v2149 = vmul.f32 %v2148, 0.6931472
        %v2150 = vmul.f32 -0.5, %v1986
        %v2151 = vadd.f32 %v2150, 1.0
        %v2152 = vmul.f32 %v2151, %v1986
        %v2153 = vand.u32 2147483647, %v1986
        %vm2154 = vcmp.lt.f32.partialorder %v2153, 0.0004427343
        %v2155 = vsel %vm2154, %v2152, %v2149
        %v2156 = vadd.f32 %v1988, 1.0
        %v2157 = vlog2.pop %v2156
        %v2158 = vmul.f32 %v2157, 0.6931472
        %v2159 = vmul.f32 -0.5, %v1988
        %v2160 = vadd.f32 %v2159, 1.0
        %v2161 = vmul.f32 %v2160, %v1988
        %v2162 = vand.u32 2147483647, %v1988
        %vm2163 = vcmp.lt.f32.partialorder %v2162, 0.0004427343
        %v2164 = vsel %vm2163, %v2161, %v2158
        %v2165 = vadd.f32 %v1990, 1.0
        %v2166 = vlog2.pop %v2165
        %v2167 = vmul.f32 %v2166, 0.6931472
        %v2168 = vmul.f32 -0.5, %v1990
        %v2169 = vadd.f32 %v2168, 1.0
        %v2170 = vmul.f32 %v2169, %v1990
        %v2171 = vand.u32 2147483647, %v1990
        %vm2172 = vcmp.lt.f32.partialorder %v2171, 0.0004427343
        %v2173 = vsel %vm2172, %v2170, %v2167
        %v2174 = vadd.f32 %v1992, 1.0
        %v2175 = vlog2.pop %v2174
        %v2176 = vmul.f32 %v2175, 0.6931472
        %v2177 = vmul.f32 -0.5, %v1992
        %v2178 = vadd.f32 %v2177, 1.0
        %v2179 = vmul.f32 %v2178, %v1992
        %v2180 = vand.u32 2147483647, %v1992
        %vm2181 = vcmp.lt.f32.partialorder %v2180, 0.0004427343
        %v2182 = vsel %vm2181, %v2179, %v2176
        %v2183 = vadd.f32 %v1994, 1.0
        %v2184 = vlog2.pop %v2183
        %v2185 = vmul.f32 %v2184, 0.6931472
        %v2186 = vmul.f32 -0.5, %v1994
        %v2187 = vadd.f32 %v2186, 1.0
        %v2188 = vmul.f32 %v2187, %v1994
        %v2189 = vand.u32 2147483647, %v1994
        %vm2190 = vcmp.lt.f32.partialorder %v2189, 0.0004427343
        %v2191 = vsel %vm2190, %v2188, %v2185
        %v2192 = vadd.f32 %v1996, 1.0
        %v2193 = vlog2.pop %v2192
        %v2194 = vmul.f32 %v2193, 0.6931472
        %v2195 = vmul.f32 -0.5, %v1996
        %v2196 = vadd.f32 %v2195, 1.0
        %v2197 = vmul.f32 %v2196, %v1996
        %v2198 = vand.u32 2147483647, %v1996
        %vm2199 = vcmp.lt.f32.partialorder %v2198, 0.0004427343
        %v2200 = vsel %vm2199, %v2197, %v2194
        %v2201 = vadd.f32 %v1998, 1.0
        %v2202 = vlog2.pop %v2201
        %v2203 = vmul.f32 %v2202, 0.6931472
        %v2204 = vmul.f32 -0.5, %v1998
        %v2205 = vadd.f32 %v2204, 1.0
        %v2206 = vmul.f32 %v2205, %v1998
        %v2207 = vand.u32 2147483647, %v1998
        %vm2208 = vcmp.lt.f32.partialorder %v2207, 0.0004427343
        %v2209 = vsel %vm2208, %v2206, %v2203
        %v2210 = vadd.f32 %v2000, 1.0
        %v2211 = vlog2.pop %v2210
        %v2212 = vmul.f32 %v2211, 0.6931472
        %v2213 = vmul.f32 -0.5, %v2000
        %v2214 = vadd.f32 %v2213, 1.0
        %v2215 = vmul.f32 %v2214, %v2000
        %v2216 = vand.u32 2147483647, %v2000
        %vm2217 = vcmp.lt.f32.partialorder %v2216, 0.0004427343
        %v2218 = vsel %vm2217, %v2215, %v2212
        %v2219 = vadd.f32 %v2002, 1.0
        %v2220 = vlog2.pop %v2219
        %v2221 = vmul.f32 %v2220, 0.6931472
        %v2222 = vmul.f32 -0.5, %v2002
        %v2223 = vadd.f32 %v2222, 1.0
        %v2224 = vmul.f32 %v2223, %v2002
        %v2225 = vand.u32 2147483647, %v2002
        %vm2226 = vcmp.lt.f32.partialorder %v2225, 0.0004427343
        %v2227 = vsel %vm2226, %v2224, %v2221
        %v2228 = vadd.f32 %v2004, 1.0
        %v2229 = vlog2.pop %v2228
        %v2230 = vmul.f32 %v2229, 0.6931472
        %v2231 = vmul.f32 -0.5, %v2004
        %v2232 = vadd.f32 %v2231, 1.0
        %v2233 = vmul.f32 %v2232, %v2004
        %v2234 = vand.u32 2147483647, %v2004
        %vm2235 = vcmp.lt.f32.partialorder %v2234, 0.0004427343
        %v2236 = vsel %vm2235, %v2233, %v2230
        %v2237 = vadd.f32 %v2006, 1.0
        %v2238 = vlog2.pop %v2237
        %v2239 = vmul.f32 %v2238, 0.6931472
        %v2240 = vmul.f32 -0.5, %v2006
        %v2241 = vadd.f32 %v2240, 1.0
        %v2242 = vmul.f32 %v2241, %v2006
        %v2243 = vand.u32 2147483647, %v2006
        %vm2244 = vcmp.lt.f32.partialorder %v2243, 0.0004427343
        %v2245 = vsel %vm2244, %v2242, %v2239
        %v2246 = vadd.f32 %v2008, 1.0
        %v2247 = vlog2.pop %v2246
        %v2248 = vmul.f32 %v2247, 0.6931472
        %v2249 = vmul.f32 -0.5, %v2008
        %v2250 = vadd.f32 %v2249, 1.0
        %v2251 = vmul.f32 %v2250, %v2008
        %v2252 = vand.u32 2147483647, %v2008
        %vm2253 = vcmp.lt.f32.partialorder %v2252, 0.0004427343
        %v2254 = vsel %vm2253, %v2251, %v2248
        %v2255 = vadd.f32 %v2010, 1.0
        %v2256 = vlog2.pop %v2255
        %v2257 = vmul.f32 %v2256, 0.6931472
        %v2258 = vmul.f32 -0.5, %v2010
        %v2259 = vadd.f32 %v2258, 1.0
        %v2260 = vmul.f32 %v2259, %v2010
        %v2261 = vand.u32 2147483647, %v2010
        %vm2262 = vcmp.lt.f32.partialorder %v2261, 0.0004427343
        %v2263 = vsel %vm2262, %v2260, %v2257
        %v2264 = vadd.f32 %v2012, 1.0
        %v2265 = vlog2.pop %v2264
        %v2266 = vmul.f32 %v2265, 0.6931472
        %v2267 = vmul.f32 -0.5, %v2012
        %v2268 = vadd.f32 %v2267, 1.0
        %v2269 = vmul.f32 %v2268, %v2012
        %v2270 = vand.u32 2147483647, %v2012
        %vm2271 = vcmp.lt.f32.partialorder %v2270, 0.0004427343
        %v2272 = vsel %vm2271, %v2269, %v2266
        %v2273 = vadd.f32 %v2014, 1.0
        %v2274 = vlog2.pop %v2273
        %v2275 = vmul.f32 %v2274, 0.6931472
        %v2276 = vmul.f32 -0.5, %v2014
        %v2277 = vadd.f32 %v2276, 1.0
        %v2278 = vmul.f32 %v2277, %v2014
        %v2279 = vand.u32 2147483647, %v2014
        %vm2280 = vcmp.lt.f32.partialorder %v2279, 0.0004427343
        %v2281 = vsel %vm2280, %v2278, %v2275
        %v2282 = vadd.f32 %v2016, 1.0
        %v2283 = vlog2.pop %v2282
        %v2284 = vmul.f32 %v2283, 0.6931472
        %v2285 = vmul.f32 -0.5, %v2016
        %v2286 = vadd.f32 %v2285, 1.0
        %v2287 = vmul.f32 %v2286, %v2016
        %v2288 = vand.u32 2147483647, %v2016
        %vm2289 = vcmp.lt.f32.partialorder %v2288, 0.0004427343
        %v2290 = vsel %vm2289, %v2287, %v2284
        %v2291 = vadd.f32 %v2018, 1.0
        %v2292 = vlog2.pop %v2291
        %v2293 = vmul.f32 %v2292, 0.6931472
        %v2294 = vmul.f32 -0.5, %v2018
        %v2295 = vadd.f32 %v2294, 1.0
        %v2296 = vmul.f32 %v2295, %v2018
        %v2297 = vand.u32 2147483647, %v2018
        %vm2298 = vcmp.lt.f32.partialorder %v2297, 0.0004427343
        %v2299 = vsel %vm2298, %v2296, %v2293
        %v2300 = vadd.f32 %v2020, 1.0
        %v2301 = vlog2.pop %v2300
        %v2302 = vmul.f32 %v2301, 0.6931472
        %v2303 = vmul.f32 -0.5, %v2020
        %v2304 = vadd.f32 %v2303, 1.0
        %v2305 = vmul.f32 %v2304, %v2020
        %v2306 = vand.u32 2147483647, %v2020
        %vm2307 = vcmp.lt.f32.partialorder %v2306, 0.0004427343
        %v2308 = vsel %vm2307, %v2305, %v2302
        %v2309 = vadd.f32 %v1861, %v2029
        %v2310 = vadd.f32 %v1862, %v2038
        %v2311 = vadd.f32 %v1863, %v2047
        %v2312 = vadd.f32 %v1864, %v2056
        %v2313 = vadd.f32 %v1865, %v2065
        %v2314 = vadd.f32 %v1866, %v2074
        %v2315 = vadd.f32 %v1867, %v2083
        %v2316 = vadd.f32 %v1868, %v2092
        %v2317 = vadd.f32 %v1869, %v2101
        %v2318 = vadd.f32 %v1870, %v2110
        %v2319 = vadd.f32 %v1871, %v2119
        %v2320 = vadd.f32 %v1872, %v2128
        %v2321 = vadd.f32 %v1873, %v2137
        %v2322 = vadd.f32 %v1874, %v2146
        %v2323 = vadd.f32 %v1875, %v2155
        %v2324 = vadd.f32 %v1876, %v2164
        %v2325 = vadd.f32 %v1877, %v2173
        %v2326 = vadd.f32 %v1878, %v2182
        %v2327 = vadd.f32 %v1879, %v2191
        %v2328 = vadd.f32 %v1880, %v2200
        %v2329 = vadd.f32 %v1881, %v2209
        %v2330 = vadd.f32 %v1882, %v2218
        %v2331 = vadd.f32 %v1883, %v2227
        %v2332 = vadd.f32 %v1884, %v2236
        %v2333 = vadd.f32 %v1885, %v2245
        %v2334 = vadd.f32 %v1886, %v2254
        %v2335 = vadd.f32 %v1887, %v2263
        %v2336 = vadd.f32 %v1888, %v2272
        %v2337 = vadd.f32 %v1889, %v2281
        %v2338 = vadd.f32 %v1890, %v2290
        %v2339 = vadd.f32 %v1891, %v2299
        %v2340 = vadd.f32 %v1892, %v2308
        %v2341 = vadd.f32 %v2309, %v2310
        %2342 = vadd.xlane.f32.xlu0 %v2341
        %v2343 = vpop.xlane.xlu0 %2342
        %v2344 = vadd.f32 %v2311, %v2312
        %2345 = vadd.xlane.f32.xlu0 %v2344
        %v2346 = vpop.xlane.xlu0 %2345
        %v2347 = vadd.f32 %v2313, %v2314
        %2348 = vadd.xlane.f32.xlu0 %v2347
        %v2349 = vpop.xlane.xlu0 %2348
        %v2350 = vadd.f32 %v2315, %v2316
        %2351 = vadd.xlane.f32.xlu0 %v2350
        %v2352 = vpop.xlane.xlu0 %2351
        %v2353 = vadd.f32 %v2317, %v2318
        %2354 = vadd.xlane.f32.xlu0 %v2353
        %v2355 = vpop.xlane.xlu0 %2354
        %v2356 = vadd.f32 %v2319, %v2320
        %2357 = vadd.xlane.f32.xlu0 %v2356
        %v2358 = vpop.xlane.xlu0 %2357
        %v2359 = vadd.f32 %v2321, %v2322
        %2360 = vadd.xlane.f32.xlu0 %v2359
        %v2361 = vpop.xlane.xlu0 %2360
        %v2362 = vadd.f32 %v2323, %v2324
        %2363 = vadd.xlane.f32.xlu0 %v2362
        %v2364 = vpop.xlane.xlu0 %2363
        %v2365 = vadd.f32 %v2325, %v2326
        %2366 = vadd.xlane.f32.xlu0 %v2365
        %v2367 = vpop.xlane.xlu0 %2366
        %v2368 = vadd.f32 %v2327, %v2328
        %2369 = vadd.xlane.f32.xlu0 %v2368
        %v2370 = vpop.xlane.xlu0 %2369
        %v2371 = vadd.f32 %v2329, %v2330
        %2372 = vadd.xlane.f32.xlu0 %v2371
        %v2373 = vpop.xlane.xlu0 %2372
        %v2374 = vadd.f32 %v2331, %v2332
        %2375 = vadd.xlane.f32.xlu0 %v2374
        %v2376 = vpop.xlane.xlu0 %2375
        %v2377 = vadd.f32 %v2333, %v2334
        %2378 = vadd.xlane.f32.xlu0 %v2377
        %v2379 = vpop.xlane.xlu0 %2378
        %v2380 = vadd.f32 %v2335, %v2336
        %2381 = vadd.xlane.f32.xlu0 %v2380
        %v2382 = vpop.xlane.xlu0 %2381
        %v2383 = vadd.f32 %v2337, %v2338
        %2384 = vadd.xlane.f32.xlu0 %v2383
        %v2385 = vpop.xlane.xlu0 %2384
        %v2386 = vadd.f32 %v2339, %v2340
        %2387 = vadd.xlane.f32.xlu0 %v2386
        %v2388 = vpop.xlane.xlu0 %2387
        %v2389 = vsub.f32 0.0, %v2343
        %v2390 = vsub.f32 0.0, %v2346
        %v2391 = vsub.f32 0.0, %v2349
        %v2392 = vsub.f32 0.0, %v2352
        %v2393 = vsub.f32 0.0, %v2355
        %v2394 = vsub.f32 0.0, %v2358
        %v2395 = vsub.f32 0.0, %v2361
        %v2396 = vsub.f32 0.0, %v2364
        %v2397 = vsub.f32 0.0, %v2367
        %v2398 = vsub.f32 0.0, %v2370
        %v2399 = vsub.f32 0.0, %v2373
        %v2400 = vsub.f32 0.0, %v2376
        %v2401 = vsub.f32 0.0, %v2379
        %v2402 = vsub.f32 0.0, %v2382
        %v2403 = vsub.f32 0.0, %v2385
        %v2404 = vsub.f32 0.0, %v2388
        %v2405 = vmul.f32 %v881, 2.0
        %v2406 = vmul.f32 %v884, 2.0
        %v2407 = vmul.f32 %v889, 2.0
        %v2408 = vmul.f32 %v892, 2.0
        %v2409 = vmul.f32 %v897, 2.0
        %v2410 = vmul.f32 %v900, 2.0
        %v2411 = vmul.f32 %v905, 2.0
        %v2412 = vmul.f32 %v908, 2.0
        %v2413 = vmul.f32 %v913, 2.0
        %v2414 = vmul.f32 %v916, 2.0
        %v2415 = vmul.f32 %v921, 2.0
        %v2416 = vmul.f32 %v924, 2.0
        %v2417 = vmul.f32 %v929, 2.0
        %v2418 = vmul.f32 %v932, 2.0
        %v2419 = vmul.f32 %v937, 2.0
        %v2420 = vmul.f32 %v940, 2.0
        %v2421 = vadd.f32 %v2405, 1.0
        %v2422 = vadd.f32 %v2406, 1.0
        %v2423 = vadd.f32 %v2407, 1.0
        %v2424 = vadd.f32 %v2408, 1.0
        %v2425 = vadd.f32 %v2409, 1.0
        %v2426 = vadd.f32 %v2410, 1.0
        %v2427 = vadd.f32 %v2411, 1.0
        %v2428 = vadd.f32 %v2412, 1.0
        %v2429 = vadd.f32 %v2413, 1.0
        %v2430 = vadd.f32 %v2414, 1.0
        %v2431 = vadd.f32 %v2415, 1.0
        %v2432 = vadd.f32 %v2416, 1.0
        %v2433 = vadd.f32 %v2417, 1.0
        %v2434 = vadd.f32 %v2418, 1.0
        %v2435 = vadd.f32 %v2419, 1.0
        %v2436 = vadd.f32 %v2420, 1.0
        %v2437 = vmul.f32 %v881, %v881
        %v2438 = vmul.f32 %v884, %v884
        %v2439 = vmul.f32 %v889, %v889
        %v2440 = vmul.f32 %v892, %v892
        %v2441 = vmul.f32 %v897, %v897
        %v2442 = vmul.f32 %v900, %v900
        %v2443 = vmul.f32 %v905, %v905
        %v2444 = vmul.f32 %v908, %v908
        %v2445 = vmul.f32 %v913, %v913
        %v2446 = vmul.f32 %v916, %v916
        %v2447 = vmul.f32 %v921, %v921
        %v2448 = vmul.f32 %v924, %v924
        %v2449 = vmul.f32 %v929, %v929
        %v2450 = vmul.f32 %v932, %v932
        %v2451 = vmul.f32 %v937, %v937
        %v2452 = vmul.f32 %v940, %v940
        %2469 = vrot.lane.b32.xlu0 %v2437, 32
        %v2470 = vpop.permute.xlu0 %2469
        %2471 = vrot.lane.b32.xlu0 %v2438, 32
        %v2472 = vpop.permute.xlu0 %2471
        %2473 = vrot.lane.b32.xlu0 %v2439, 32
        %v2474 = vpop.permute.xlu0 %2473
        %2475 = vrot.lane.b32.xlu0 %v2440, 32
        %v2476 = vpop.permute.xlu0 %2475
        %2477 = vrot.lane.b32.xlu0 %v2441, 32
        %v2478 = vpop.permute.xlu0 %2477
        %2479 = vrot.lane.b32.xlu0 %v2442, 32
        %v2480 = vpop.permute.xlu0 %2479
        %2481 = vrot.lane.b32.xlu0 %v2443, 32
        %v2482 = vpop.permute.xlu0 %2481
        %2483 = vrot.lane.b32.xlu0 %v2444, 32
        %v2484 = vpop.permute.xlu0 %2483
        %2485 = vrot.lane.b32.xlu0 %v2445, 32
        %v2486 = vpop.permute.xlu0 %2485
        %2487 = vrot.lane.b32.xlu0 %v2446, 32
        %v2488 = vpop.permute.xlu0 %2487
        %2489 = vrot.lane.b32.xlu0 %v2447, 32
        %v2490 = vpop.permute.xlu0 %2489
        %2491 = vrot.lane.b32.xlu0 %v2448, 32
        %v2492 = vpop.permute.xlu0 %2491
        %2493 = vrot.lane.b32.xlu0 %v2449, 32
        %v2494 = vpop.permute.xlu0 %2493
        %2495 = vrot.lane.b32.xlu0 %v2450, 32
        %v2496 = vpop.permute.xlu0 %2495
        %2497 = vrot.lane.b32.xlu0 %v2451, 32
        %v2498 = vpop.permute.xlu0 %2497
        %2499 = vrot.lane.b32.xlu0 %v2452, 32
        %v2500 = vpop.permute.xlu0 %2499
        %v2517 = vsub.f32 %v2421, %v2470
        %v2518 = vsub.f32 %v2422, %v2472
        %v2519 = vsub.f32 %v2423, %v2474
        %v2520 = vsub.f32 %v2424, %v2476
        %v2521 = vsub.f32 %v2425, %v2478
        %v2522 = vsub.f32 %v2426, %v2480
        %v2523 = vsub.f32 %v2427, %v2482
        %v2524 = vsub.f32 %v2428, %v2484
        %v2525 = vsub.f32 %v2429, %v2486
        %v2526 = vsub.f32 %v2430, %v2488
        %v2527 = vsub.f32 %v2431, %v2490
        %v2528 = vsub.f32 %v2432, %v2492
        %v2529 = vsub.f32 %v2433, %v2494
        %v2530 = vsub.f32 %v2434, %v2496
        %v2531 = vsub.f32 %v2435, %v2498
        %v2532 = vsub.f32 %v2436, %v2500
        %v2533 = vmul.f32 %v944, %v944
        %v2534 = vmul.f32 %v946, %v946
        %v2535 = vmul.f32 %v948, %v948
        %v2536 = vmul.f32 %v950, %v950
        %v2537 = vmul.f32 %v952, %v952
        %v2538 = vmul.f32 %v954, %v954
        %v2539 = vmul.f32 %v956, %v956
        %v2540 = vmul.f32 %v958, %v958
        %v2541 = vmul.f32 %v960, %v960
        %v2542 = vmul.f32 %v962, %v962
        %v2543 = vmul.f32 %v964, %v964
        %v2544 = vmul.f32 %v966, %v966
        %v2545 = vmul.f32 %v968, %v968
        %v2546 = vmul.f32 %v970, %v970
        %v2547 = vmul.f32 %v972, %v972
        %v2548 = vmul.f32 %v974, %v974
        %v2549 = vsub.f32 %v2517, %v2533
        %v2550 = vsub.f32 %v2518, %v2534
        %v2551 = vsub.f32 %v2519, %v2535
        %v2552 = vsub.f32 %v2520, %v2536
        %v2553 = vsub.f32 %v2521, %v2537
        %v2554 = vsub.f32 %v2522, %v2538
        %v2555 = vsub.f32 %v2523, %v2539
        %v2556 = vsub.f32 %v2524, %v2540
        %v2557 = vsub.f32 %v2525, %v2541
        %v2558 = vsub.f32 %v2526, %v2542
        %v2559 = vsub.f32 %v2527, %v2543
        %v2560 = vsub.f32 %v2528, %v2544
        %v2561 = vsub.f32 %v2529, %v2545
        %v2562 = vsub.f32 %v2530, %v2546
        %v2563 = vsub.f32 %v2531, %v2547
        %v2564 = vsub.f32 %v2532, %v2548
        %2581 = vrot.lane.b32.xlu0 %v2549, 96
        %v2582 = vpop.permute.xlu0 %2581
        %2583 = vrot.lane.b32.xlu0 %v2550, 96
        %v2584 = vpop.permute.xlu0 %2583
        %2585 = vrot.lane.b32.xlu0 %v2551, 96
        %v2586 = vpop.permute.xlu0 %2585
        %2587 = vrot.lane.b32.xlu0 %v2552, 96
        %v2588 = vpop.permute.xlu0 %2587
        %2589 = vrot.lane.b32.xlu0 %v2553, 96
        %v2590 = vpop.permute.xlu0 %2589
        %2591 = vrot.lane.b32.xlu0 %v2554, 96
        %v2592 = vpop.permute.xlu0 %2591
        %2593 = vrot.lane.b32.xlu0 %v2555, 96
        %v2594 = vpop.permute.xlu0 %2593
        %2595 = vrot.lane.b32.xlu0 %v2556, 96
        %v2596 = vpop.permute.xlu0 %2595
        %2597 = vrot.lane.b32.xlu0 %v2557, 96
        %v2598 = vpop.permute.xlu0 %2597
        %2599 = vrot.lane.b32.xlu0 %v2558, 96
        %v2600 = vpop.permute.xlu0 %2599
        %2601 = vrot.lane.b32.xlu0 %v2559, 96
        %v2602 = vpop.permute.xlu0 %2601
        %2603 = vrot.lane.b32.xlu0 %v2560, 96
        %v2604 = vpop.permute.xlu0 %2603
        %2605 = vrot.lane.b32.xlu0 %v2561, 96
        %v2606 = vpop.permute.xlu0 %2605
        %2607 = vrot.lane.b32.xlu0 %v2562, 96
        %v2608 = vpop.permute.xlu0 %2607
        %2609 = vrot.lane.b32.xlu0 %v2563, 96
        %v2610 = vpop.permute.xlu0 %2609
        %2611 = vrot.lane.b32.xlu0 %v2564, 96
        %v2612 = vpop.permute.xlu0 %2611
        %v2629 = vsel %vm1194, %v2582, 0.0
        %2630 = vadd.xlane.f32.xlu0 %v2629
        %v2631 = vpop.xlane.xlu0 %2630
        %v2632 = vsel %vm1194, %v2584, 0.0
        %2633 = vadd.xlane.f32.xlu0 %v2632
        %v2634 = vpop.xlane.xlu0 %2633
        %v2635 = vsel %vm1194, %v2586, 0.0
        %2636 = vadd.xlane.f32.xlu0 %v2635
        %v2637 = vpop.xlane.xlu0 %2636
        %v2638 = vsel %vm1194, %v2588, 0.0
        %2639 = vadd.xlane.f32.xlu0 %v2638
        %v2640 = vpop.xlane.xlu0 %2639
        %v2641 = vsel %vm1194, %v2590, 0.0
        %2642 = vadd.xlane.f32.xlu0 %v2641
        %v2643 = vpop.xlane.xlu0 %2642
        %v2644 = vsel %vm1194, %v2592, 0.0
        %2645 = vadd.xlane.f32.xlu0 %v2644
        %v2646 = vpop.xlane.xlu0 %2645
        %v2647 = vsel %vm1194, %v2594, 0.0
        %2648 = vadd.xlane.f32.xlu0 %v2647
        %v2649 = vpop.xlane.xlu0 %2648
        %v2650 = vsel %vm1194, %v2596, 0.0
        %2651 = vadd.xlane.f32.xlu0 %v2650
        %v2652 = vpop.xlane.xlu0 %2651
        %v2653 = vsel %vm1194, %v2598, 0.0
        %2654 = vadd.xlane.f32.xlu0 %v2653
        %v2655 = vpop.xlane.xlu0 %2654
        %v2656 = vsel %vm1194, %v2600, 0.0
        %2657 = vadd.xlane.f32.xlu0 %v2656
        %v2658 = vpop.xlane.xlu0 %2657
        %v2659 = vsel %vm1194, %v2602, 0.0
        %2660 = vadd.xlane.f32.xlu0 %v2659
        %v2661 = vpop.xlane.xlu0 %2660
        %v2662 = vsel %vm1194, %v2604, 0.0
        %2663 = vadd.xlane.f32.xlu0 %v2662
        %v2664 = vpop.xlane.xlu0 %2663
        %v2665 = vsel %vm1194, %v2606, 0.0
        %2666 = vadd.xlane.f32.xlu0 %v2665
        %v2667 = vpop.xlane.xlu0 %2666
        %v2668 = vsel %vm1194, %v2608, 0.0
        %2669 = vadd.xlane.f32.xlu0 %v2668
        %v2670 = vpop.xlane.xlu0 %2669
        %v2671 = vsel %vm1194, %v2610, 0.0
        %2672 = vadd.xlane.f32.xlu0 %v2671
        %v2673 = vpop.xlane.xlu0 %2672
        %v2674 = vsel %vm1194, %v2612, 0.0
        %2675 = vadd.xlane.f32.xlu0 %v2674
        %v2676 = vpop.xlane.xlu0 %2675
        %v2677 = vmul.f32 %v2631, 0.5
        %v2678 = vmul.f32 %v2634, 0.5
        %v2679 = vmul.f32 %v2637, 0.5
        %v2680 = vmul.f32 %v2640, 0.5
        %v2681 = vmul.f32 %v2643, 0.5
        %v2682 = vmul.f32 %v2646, 0.5
        %v2683 = vmul.f32 %v2649, 0.5
        %v2684 = vmul.f32 %v2652, 0.5
        %v2685 = vmul.f32 %v2655, 0.5
        %v2686 = vmul.f32 %v2658, 0.5
        %v2687 = vmul.f32 %v2661, 0.5
        %v2688 = vmul.f32 %v2664, 0.5
        %v2689 = vmul.f32 %v2667, 0.5
        %v2690 = vmul.f32 %v2670, 0.5
        %v2691 = vmul.f32 %v2673, 0.5
        %v2692 = vmul.f32 %v2676, 0.5
        %v2693 = vadd.f32 %v2389, %v2677
        %v2694 = vadd.f32 %v2390, %v2678
        %v2695 = vadd.f32 %v2391, %v2679
        %v2696 = vadd.f32 %v2392, %v2680
        %v2697 = vadd.f32 %v2393, %v2681
        %v2698 = vadd.f32 %v2394, %v2682
        %v2699 = vadd.f32 %v2395, %v2683
        %v2700 = vadd.f32 %v2396, %v2684
        %v2701 = vadd.f32 %v2397, %v2685
        %v2702 = vadd.f32 %v2398, %v2686
        %v2703 = vadd.f32 %v2399, %v2687
        %v2704 = vadd.f32 %v2400, %v2688
        %v2705 = vadd.f32 %v2401, %v2689
        %v2706 = vadd.f32 %v2402, %v2690
        %v2707 = vadd.f32 %v2403, %v2691
        %v2708 = vadd.f32 %v2404, %v2692
        %v2725 = vlaneseq
        %v2726 = vand.u32 %v2725, 127
        %v2727 = vlaneseq
        %v2728 = vshrl.u32 %v2727, 7
        %v2729 = vsub.s32 %v2726, %v2728
        %v2730 = vrot.slane %v2693, %v2729
        %v2731 = vadd.s32 %v2726, 4294967288
        %v2732 = vlaneseq
        %v2733 = vshrl.u32 %v2732, 7
        %v2734 = vsub.s32 %v2731, %v2733
        %v2735 = vrot.slane %v2694, %v2734
        %vm2736 = vcmask 130112
        %v2737 = vsel %vm2736, %v2735, %v2730
        %v2738 = vadd.s32 %v2726, 4294967280
        %v2739 = vlaneseq
        %v2740 = vshrl.u32 %v2739, 7
        %v2741 = vsub.s32 %v2738, %v2740
        %v2742 = vrot.slane %v2695, %v2741
        %vm2743 = vcmask 195712
        %v2744 = vsel %vm2743, %v2742, %v2737
        %v2745 = vadd.s32 %v2726, 4294967272
        %v2746 = vlaneseq
        %v2747 = vshrl.u32 %v2746, 7
        %v2748 = vsub.s32 %v2745, %v2747
        %v2749 = vrot.slane %v2696, %v2748
        %vm2750 = vcmask 261312
        %v2751 = vsel %vm2750, %v2749, %v2744
        %v2752 = vadd.s32 %v2726, 4294967264
        %v2753 = vlaneseq
        %v2754 = vshrl.u32 %v2753, 7
        %v2755 = vsub.s32 %v2752, %v2754
        %v2756 = vrot.slane %v2697, %v2755
        %vm2757 = vcmask 326912
        %v2758 = vsel %vm2757, %v2756, %v2751
        %v2759 = vadd.s32 %v2726, 4294967256
        %v2760 = vlaneseq
        %v2761 = vshrl.u32 %v2760, 7
        %v2762 = vsub.s32 %v2759, %v2761
        %v2763 = vrot.slane %v2698, %v2762
        %vm2764 = vcmask 392512
        %v2765 = vsel %vm2764, %v2763, %v2758
        %v2766 = vadd.s32 %v2726, 4294967248
        %v2767 = vlaneseq
        %v2768 = vshrl.u32 %v2767, 7
        %v2769 = vsub.s32 %v2766, %v2768
        %v2770 = vrot.slane %v2699, %v2769
        %vm2771 = vcmask 458112
        %v2772 = vsel %vm2771, %v2770, %v2765
        %v2773 = vadd.s32 %v2726, 4294967240
        %v2774 = vlaneseq
        %v2775 = vshrl.u32 %v2774, 7
        %v2776 = vsub.s32 %v2773, %v2775
        %v2777 = vrot.slane %v2700, %v2776
        %vm2778 = vcmask 523712
        %v2779 = vsel %vm2778, %v2777, %v2772
        %v2780 = vadd.s32 %v2726, 4294967232
        %v2781 = vlaneseq
        %v2782 = vshrl.u32 %v2781, 7
        %v2783 = vsub.s32 %v2780, %v2782
        %v2784 = vrot.slane %v2701, %v2783
        %vm2785 = vcmask 589312
        %v2786 = vsel %vm2785, %v2784, %v2779
        %v2787 = vadd.s32 %v2726, 4294967224
        %v2788 = vlaneseq
        %v2789 = vshrl.u32 %v2788, 7
        %v2790 = vsub.s32 %v2787, %v2789
        %v2791 = vrot.slane %v2702, %v2790
        %vm2792 = vcmask 654912
        %v2793 = vsel %vm2792, %v2791, %v2786
        %v2794 = vadd.s32 %v2726, 4294967216
        %v2795 = vlaneseq
        %v2796 = vshrl.u32 %v2795, 7
        %v2797 = vsub.s32 %v2794, %v2796
        %v2798 = vrot.slane %v2703, %v2797
        %vm2799 = vcmask 720512
        %v2800 = vsel %vm2799, %v2798, %v2793
        %v2801 = vadd.s32 %v2726, 4294967208
        %v2802 = vlaneseq
        %v2803 = vshrl.u32 %v2802, 7
        %v2804 = vsub.s32 %v2801, %v2803
        %v2805 = vrot.slane %v2704, %v2804
        %vm2806 = vcmask 786112
        %v2807 = vsel %vm2806, %v2805, %v2800
        %v2808 = vadd.s32 %v2726, 4294967200
        %v2809 = vlaneseq
        %v2810 = vshrl.u32 %v2809, 7
        %v2811 = vsub.s32 %v2808, %v2810
        %v2812 = vrot.slane %v2705, %v2811
        %vm2813 = vcmask 851712
        %v2814 = vsel %vm2813, %v2812, %v2807
        %v2815 = vadd.s32 %v2726, 4294967192
        %v2816 = vlaneseq
        %v2817 = vshrl.u32 %v2816, 7
        %v2818 = vsub.s32 %v2815, %v2817
        %v2819 = vrot.slane %v2706, %v2818
        %vm2820 = vcmask 917312
        %v2821 = vsel %vm2820, %v2819, %v2814
        %v2822 = vadd.s32 %v2726, 4294967184
        %v2823 = vlaneseq
        %v2824 = vshrl.u32 %v2823, 7
        %v2825 = vsub.s32 %v2822, %v2824
        %v2826 = vrot.slane %v2707, %v2825
        %vm2827 = vcmask 982912
        %v2828 = vsel %vm2827, %v2826, %v2821
        %v2829 = vadd.s32 %v2726, 4294967176
        %v2830 = vlaneseq
        %v2831 = vshrl.u32 %v2830, 7
        %v2832 = vsub.s32 %v2829, %v2831
        %v2833 = vrot.slane %v2708, %v2832
        %vm2834 = vcmask 1048512
        %v2835 = vsel %vm2834, %v2833, %v2828
        %2837 = vst [vmem:[%s235] sm:$0x1] %v2835
        %s2838 = sand.u32 %s142, 1
        %s2839 = scalar_lea.sflag [#allocation3], %s2838
        %s2840 = sand.u32 %s142, 1
        %s2841 = scalar_lea.vmem [#allocation2], %s2840
        // Predicated region
        $region41: #{tpu_custom_call.1} parent=39 // pred_check
          %p2842 = pneg %p152
        $region42: #{tpu_custom_call.1} parent=39 // pred_check_branch
          %2844 = sbr.rel (%p2842) target = $region44
        $region43: #{tpu_custom_call.1} parent=39 // pred_region
          %s2846 = ssub.s32 16, 16
          %2847 = vsyncadd %s2839, %s2846
          %s2848 = smul.addr %s19, 16
          %s2849 = scalar_lea.hbm %s5, %s2848
          %s2851 = sshll.u32 %s2841, 4
          %s2852 = int_to_ptr.vmem [resolvable:$true] %s2851
          %2854 = dma.vmem_to_hbm [thread:$0]  %s2852, 16, %s2849, %s2839
        $region44: #{tpu_custom_call.1} parent=39 // pred_fallthru
          _
      $region40: #{tpu_custom_call.1} parent=5 // pred_fallthru
        _
      %p2855 = scmp.le.s32.totalorder 2, %s14
      // Predicated region
      $region45: #{tpu_custom_call.1} parent=5 // pred_check
        %p2856 = pneg %p2855
      $region46: #{tpu_custom_call.1} parent=5 // pred_check_branch
        %2858 = sbr.rel (%p2856) target = $region48
      $region47: #{tpu_custom_call.1} parent=5 // pred_region
        %s2859 = ssub.s32 %s14, 2
        // Predicated region
        $region49: #{tpu_custom_call.1} parent=47 // pred_check
          %p2860 = pneg %p158
        $region50: #{tpu_custom_call.1} parent=47 // pred_check_branch
          %2862 = sbr.rel (%p2860) target = $region52
        $region51: #{tpu_custom_call.1} parent=47 // pred_region
          %s2863 = sand.u32 %s143, 1
          %s2864 = scalar_lea.sflag [#allocation3], %s2863
          %s2865 = sand.u32 %s143, 1
          %s2866 = scalar_lea.vmem [#allocation2], %s2865
          %2867 = dma.done %s2864, 16
        $region52: #{tpu_custom_call.1} parent=47 // pred_fallthru
          _
      $region48: #{tpu_custom_call.1} parent=5 // pred_fallthru
        _
    $region6: #{tpu_custom_call.1} parent=1 // loop_footer
      %s18 = sadd.s32 1, %s14
    $region7: #{tpu_custom_call.1} parent=1 // loop_footer_branch
      %13 = sbr.rel target = $region3
    $region8: #{tpu_custom_call.1} parent=1 // loop_exit
      _
    %2868 = vsyncpa [#allocation3], 1
    %s2869 = scalar_lea.sflag [#allocation3], 1
    %2870 = vsyncpa %s2869, 1

</llo_original>
